<compile_context>
chip_gen: v5e
topology: v5e:2x2
jax: 0.10.0
libtpu: 0.0.40
codegen_flags: <defaults>
</compile_context>

<pallas_src>
import numpy as np
import jax
import jax.numpy as jnp
from jax.experimental import pallas as pl
from jax.experimental.pallas import tpu as pltpu

# --------------------------- config (small synthetic) ------------------------
BATCH = 2
C_IN = 16
C_OUT = 64          # must be divisible by N_GROUPS (PyTorch GroupNorm requirement)
N_GROUPS = 32       # UpsampleBlock default
CG = C_OUT // N_GROUPS
IMG = 16            # H = W = 16
KSIZE = 3
SCALE = 2           # UpsampleBlock default scale_factor
EPS = 1e-5          # nn.GroupNorm default eps

assert CG == 2, "roll-based GroupNorm pairing below assumes 2 channels per group"


# ------------------------------ host-side constants (reference only) ---------
def _upsample_matrix(n, factor=2):
    """Interp matrix matching F.interpolate(mode='bilinear', align_corners=False)."""
    m = np.zeros((factor * n, n), dtype=np.float32)
    for o in range(factor * n):
        src = (o + 0.5) / factor - 0.5
        src = max(src, 0.0)              # torch clamps negative source coords
        i0 = min(int(np.floor(src)), n - 1)
        i1 = min(i0 + 1, n - 1)
        w1 = src - i0
        m[o, i0] += 1.0 - w1
        m[o, i1] += w1
    return m


# ------------------------------ wrapper-side im2col --------------------------
def _im2col(x):
    """(B, C_in, H, W) -> (C_in*9, B*H*W) patches, tap order (c, ky, kx).

    Matches conv weight flattening w.reshape(C_OUT, C_in*3*3); batch is fused
    along the lane (N) axis so the kernel's conv matmul needs no reshapes."""
    B, C, H, W = x.shape
    xp = jnp.pad(x, ((0, 0), (0, 0), (1, 1), (1, 1)))
    taps = [xp[:, :, ky:ky + H, kx:kx + W]
            for ky in range(KSIZE) for kx in range(KSIZE)]
    t = jnp.stack(taps, axis=2).reshape(B, C * KSIZE * KSIZE, H * W)
    return t.transpose(1, 0, 2).reshape(C * KSIZE * KSIZE, B * H * W)
    # TODO(synk): for production H,W move the 3x3 im2col into the kernel (DMA a
    # padded (C_in, H+2, W+2) tile, accumulate 9 shifted matmuls) to avoid the
    # 9x HBM blow-up of wrapper-side im2col; negligible at 16x16.


# ------------------------------ fused Pallas kernel ---------------------------
def _make_kernel(BB, H, W):
    S = H * W
    NL = BB * S  # fused lane extent per grid step

    def kernel(p_ref, w_ref, pp_ref, o_ref):
        """conv(3x3) -> GroupNorm -> ReLU -> separable bilinear x2 for BB images.

        p_ref : (K, BB*HW)        bf16  im2col patches (batch fused along lanes)
        w_ref : (C_OUT, K)        bf16  conv weight
        pp_ref: (C_OUT, 3)        f32   packed [bias, gamma, beta]
        o_ref : (4, C_OUT, BB*HW) f32   the 4 (dh, dw) upsample phases
        """
        # ---- 3x3 conv as a single MXU matmul, f32 accumulation ---------------
        conv = jnp.dot(w_ref[...], p_ref[...],
                       preferred_element_type=jnp.float32)          # (C_OUT, NL)
        bias = pp_ref[:, 0:1]
        gamma = pp_ref[:, 1:2]
        beta = pp_ref[:, 2:3]
        conv = conv + bias

        # ---- GroupNorm (2 channels/group) + ReLU, per fused image -----------
        # Pair-sum of adjacent channel rows via XLU sublane roll + parity select
        # (no indicator matmuls on the critical path).
        is_even = (jax.lax.broadcasted_iota(jnp.int32, (C_OUT, 2), 0) % 2) == 0
        inv_n = 1.0 / float(CG * S)
        segs = []
        for b in range(BB):
            seg = conv[:, b * S:(b + 1) * S]                         # (C_OUT, S)
            rs = jnp.sum(seg, axis=1, keepdims=True)                 # (C_OUT, 1)
            rq = jnp.sum(seg * seg, axis=1, keepdims=True)           # (C_OUT, 1)
            st = jnp.concatenate([rs, rq], axis=1)                   # (C_OUT, 2)
            nxt = pltpu.roll(st, shift=C_OUT - 1, axis=0)            # st[c + 1]
            prv = pltpu.roll(st, shift=1, axis=0)                    # st[c - 1]
            gst = st + jnp.where(is_even, nxt, prv)                  # group sums
            gmean = gst[:, 0:1] * inv_n
            # single-pass E[x^2]-E[x]^2 variance: fine at the 0.1 tolerance used
            gvar = gst[:, 1:2] * inv_n - gmean * gmean
            rstd = jax.lax.rsqrt(gvar + EPS)
            yb = (seg - gmean) * (rstd * gamma) + beta
            segs.append(jnp.maximum(yb, 0.0))                        # ReLU
        y = segs[0] if BB == 1 else jnp.concatenate(segs, axis=1)    # (C_OUT, NL)

        # ---- separable bilinear x2 (align_corners=False) ---------------------
        # out(2i+dh, 2j+dw) = 0.75*in(i,j)-tap + 0.25*clamped-neighbour, per axis.
        # Neighbours come from XLU lane rolls (H step: roll by W lanes, W step:
        # roll by 1 lane); border clamps are lane-index selects.  Rolls that wrap
        # across image/row boundaries land only on clamped (masked) lanes.
        lane = jax.lax.broadcasted_iota(jnp.int32, (C_OUT, NL), 1)
        top = (lane % S) < W
        bot = (lane % S) >= (S - W)
        left = (lane % W) == 0
        right = (lane % W) == (W - 1)

        up = jnp.where(top, y, pltpu.roll(y, shift=W, axis=1))        # y[h-1, w]
        dn = jnp.where(bot, y, pltpu.roll(y, shift=NL - W, axis=1))   # y[h+1, w]
        yh = (0.75 * y + 0.25 * up,     # even output rows (dh = 0)
              0.75 * y + 0.25 * dn)     # odd  output rows (dh = 1)
        for dh in range(2):
            t = yh[dh]
            lf = jnp.where(left, t, pltpu.roll(t, shift=1, axis=1))        # t[w-1]
            rg = jnp.where(right, t, pltpu.roll(t, shift=NL - 1, axis=1))  # t[w+1]
            o_ref[2 * dh + 0] = 0.75 * t + 0.25 * lf    # even output cols (dw=0)
            o_ref[2 * dh + 1] = 0.75 * t + 0.25 * rg    # odd  output cols (dw=1)

    return kernel


def upsample_block_forward(x, params):
    """x: (B, C_in, H, W) f32  ->  (B, C_out, 2H, 2W) f32."""
    B, C_in, H, W = x.shape
    S = H * W
    K = C_in * KSIZE * KSIZE

    # Batch fused along the matmul N axis.  Keep >=2 grid steps so both v7x
    # TensorCores get work; on single-TC parts (v5e/v6e) set NB = 1 instead.
    NB = 2 if (B % 2 == 0 and B >= 2) else B
    BB = B // NB
    NL = BB * S

    patches = _im2col(x).astype(jnp.bfloat16)                        # (K, B*S)
    w_t = params["w"].reshape(C_OUT, K).astype(jnp.bfloat16)         # (C_OUT, K)
    pp = jnp.stack([params["b"], params["gamma"], params["beta"]],
                   axis=1).astype(jnp.float32)                       # (C_OUT, 3)

    # NOTE: output could be emitted in bf16 (halves writeback DMA) if the
    # downstream consumer accepts it; kept f32 to match the module's dtype.
    out4 = pl.pallas_call(
        _make_kernel(BB, H, W),
        out_shape=jax.ShapeDtypeStruct((4, C_OUT, B * S), jnp.float32),
        grid=(NB,),
        in_specs=[
            pl.BlockSpec((K, NL), lambda b: (0, b)),
            pl.BlockSpec((C_OUT, K), lambda b: (0, 0)),
            pl.BlockSpec((C_OUT, 3), lambda b: (0, 0)),
        ],
        out_specs=pl.BlockSpec((4, C_OUT, NL), lambda b: (0, 0, b)),
        compiler_params=pltpu.CompilerParams(
            dimension_semantics=("parallel",)),
    )(patches, w_t, pp)

    # Interleave the four (dh, dw) phases back into (2H, 2W): layout plumbing.
    out = out4.reshape(2, 2, C_OUT, B, H, W)
    out = out.transpose(3, 2, 4, 0, 5, 1).reshape(B, C_OUT, SCALE * H, SCALE * W)
    return out


# ------------------------------ pure-JAX reference ----------------------------
def _reference(x, params):
    conv = jax.lax.conv_general_dilated(
        x, params["w"], (1, 1), ((1, 1), (1, 1)),
        dimension_numbers=("NCHW", "OIHW", "NCHW"))
    conv = conv + params["b"][None, :, None, None]
    B, C, H, W = conv.shape
    g = conv.reshape(B, N_GROUPS, C // N_GROUPS, H, W)
    mu = g.mean(axis=(2, 3, 4), keepdims=True)
    var = ((g - mu) ** 2).mean(axis=(2, 3, 4), keepdims=True)
    y = ((g - mu) / jnp.sqrt(var + EPS)).reshape(B, C, H, W)
    y = y * params["gamma"][None, :, None, None] + params["beta"][None, :, None, None]
    y = jnp.maximum(y, 0.0)
    ph = jnp.asarray(_upsample_matrix(H, SCALE))
    pw = jnp.asarray(_upsample_matrix(W, SCALE))
    return jnp.einsum("oi,bcij,pj->bcop", ph, y, pw)


# ------------------------------------ main -------------------------------------
if __name__ == "__main__":
    key = jax.random.PRNGKey(0)
    kw, kb, kx = jax.random.split(key, 3)
    params = {
        "w": 0.05 * jax.random.normal(kw, (C_OUT, C_IN, KSIZE, KSIZE), jnp.float32),
        "b": 0.05 * jax.random.normal(kb, (C_OUT,), jnp.float32),
        "gamma": jnp.ones((C_OUT,), jnp.float32),
        "beta": jnp.zeros((C_OUT,), jnp.float32),
    }
    x = jax.random.normal(kx, (BATCH, C_IN, IMG, IMG), jnp.float32)

    out = jax.jit(upsample_block_forward)(x, params)
    jax.block_until_ready(out)

    assert out.shape == (BATCH, C_OUT, SCALE * IMG, SCALE * IMG), out.shape
    assert bool(jnp.all(jnp.isfinite(out)))

    ref = _reference(x, params)
    max_err = float(jnp.max(jnp.abs(out - ref)))
    assert max_err < 0.1, f"mismatch vs reference: {max_err}"   # bf16 MXU tolerance

    print("KERNEL_OK")
</pallas_src>

<mosaic_0001>
module attributes {stable_mosaic.version = 11 : i64} {
  func.func @kernel(%arg0: i32, %arg1: memref<144x256xbf16, #tpu.memory_space<vmem>>, %arg2: memref<64x144xbf16, #tpu.memory_space<vmem>>, %arg3: memref<64x3xf32, #tpu.memory_space<vmem>>, %arg4: memref<4x64x256xf32, #tpu.memory_space<vmem>>) attributes {dimension_semantics = [#tpu.dimension_semantics<parallel>], iteration_bounds = array<i64: 2>, scalar_prefetch = 0 : i64, scratch_operands = 0 : i64, tpu.core_type = #tpu.core_type<tc>, window_params = [{transform_indices = @transform_0, window_bounds = array<i64: 144, 256>}, {pipeline_mode = #tpu.pipeline_mode<synchronous>, transform_indices = @transform_1, window_bounds = array<i64: 64, 144>}, {pipeline_mode = #tpu.pipeline_mode<synchronous>, transform_indices = @transform_2, window_bounds = array<i64: 64, 3>}, {transform_indices = @transform_3, window_bounds = array<i64: 4, 64, 256>}]} {
    %c0 = arith.constant 0 : index
    %c0_0 = arith.constant 0 : index
    %0 = vector.load %arg2[%c0, %c0_0] : memref<64x144xbf16, #tpu.memory_space<vmem>>, vector<64x144xbf16>
    %c0_1 = arith.constant 0 : index
    %c0_2 = arith.constant 0 : index
    %1 = vector.load %arg1[%c0_1, %c0_2] : memref<144x256xbf16, #tpu.memory_space<vmem>>, vector<144x256xbf16>
    %cst = arith.constant dense<0.000000e+00> : vector<64x256xf32>
    %2 = tpu.matmul %0, %1, %cst {dimension_numbers = #tpu.dot_dimension_numbers<[1], [0], [0], [1], [0, 0, 1, 1], [], []>} : vector<64x144xbf16>, vector<144x256xbf16>, vector<64x256xf32> -> vector<64x256xf32>
    %c0_3 = arith.constant 0 : index
    %c0_4 = arith.constant 0 : index
    %3 = vector.load %arg3[%c0_3, %c0_4] : memref<64x3xf32, #tpu.memory_space<vmem>>, vector<64x1xf32>
    %c0_5 = arith.constant 0 : index
    %c1 = arith.constant 1 : index
    %4 = vector.load %arg3[%c0_5, %c1] : memref<64x3xf32, #tpu.memory_space<vmem>>, vector<64x1xf32>
    %c0_6 = arith.constant 0 : index
    %c2 = arith.constant 2 : index
    %5 = vector.load %arg3[%c0_6, %c2] : memref<64x3xf32, #tpu.memory_space<vmem>>, vector<64x1xf32>
    %6 = vector.broadcast %3 : vector<64x1xf32> to vector<64x256xf32>
    %7 = arith.addf %2, %6 : vector<64x256xf32>
    %8 = tpu.iota {dimensions = array<i32: 0>} : vector<64x2xi32>
    %c2_i32 = arith.constant 2 : i32
    %c0_i32 = arith.constant 0 : i32
    %9 = arith.cmpi eq, %c2_i32, %c0_i32 : i32
    %c1_i32 = arith.constant 1 : i32
    %10 = arith.select %9, %c1_i32, %c2_i32 : i32
    %11 = vector.broadcast %10 : i32 to vector<64x2xi32>
    %12 = arith.remsi %8, %11 : vector<64x2xi32>
    %c0_i32_7 = arith.constant 0 : i32
    %13 = vector.broadcast %c0_i32_7 : i32 to vector<64x2xi32>
    %14 = arith.cmpi ne, %12, %13 : vector<64x2xi32>
    %c0_i32_8 = arith.constant 0 : i32
    %15 = vector.broadcast %c0_i32_8 : i32 to vector<64x2xi32>
    %16 = arith.cmpi slt, %12, %15 : vector<64x2xi32>
    %c0_i32_9 = arith.constant 0 : i32
    %17 = arith.cmpi slt, %10, %c0_i32_9 : i32
    %18 = vector.broadcast %17 : i1 to vector<64x2xi1>
    %19 = vector.broadcast %18 : vector<64x2xi1> to vector<64x2xi1>
    %20 = arith.xori %16, %19 : vector<64x2xi1>
    %21 = arith.andi %20, %14 : vector<64x2xi1>
    %22 = vector.broadcast %10 : i32 to vector<64x2xi32>
    %23 = arith.addi %12, %22 : vector<64x2xi32>
    %24 = arith.select %21, %23, %12 : vector<64x2xi1>, vector<64x2xi32>
    %c0_i32_10 = arith.constant 0 : i32
    %25 = vector.broadcast %c0_i32_10 : i32 to vector<64x2xi32>
    %26 = arith.cmpi eq, %24, %25 : vector<64x2xi32>
    %cst_11 = arith.constant dense<0.000000e+00> : vector<64xf32>
    %27 = vector.multi_reduction <add>, %7, %cst_11 [1] : vector<64x256xf32> to vector<64xf32>
    %28 = vector.shape_cast %27 : vector<64xf32> to vector<64x1xf32>
    %29 = arith.mulf %7, %7 : vector<64x256xf32>
    %cst_12 = arith.constant dense<0.000000e+00> : vector<64xf32>
    %30 = vector.multi_reduction <add>, %29, %cst_12 [1] : vector<64x256xf32> to vector<64xf32>
    %31 = vector.shape_cast %30 : vector<64xf32> to vector<64x1xf32>
    %32 = tpu.concatenate %28, %31 in 1 : vector<64x1xf32>, vector<64x1xf32> -> vector<64x2xf32>
    %c63_i32 = arith.constant 63 : i32
    %33 = tpu.dynamic_rotate %32 by %c63_i32 dim 0 : vector<64x2xf32>, i32 -> vector<64x2xf32>
    %c1_i32_13 = arith.constant 1 : i32
    %34 = tpu.dynamic_rotate %32 by %c1_i32_13 dim 0 : vector<64x2xf32>, i32 -> vector<64x2xf32>
    %35 = arith.select %26, %33, %34 : vector<64x2xi1>, vector<64x2xf32>
    %36 = arith.addf %32, %35 : vector<64x2xf32>
    %37 = vector.extract_strided_slice %36 {offsets = [0, 0], sizes = [64, 1], strides = [1, 1]} : vector<64x2xf32> to vector<64x1xf32>
    %cst_14 = arith.constant 0.001953125 : f32
    %38 = vector.broadcast %cst_14 : f32 to vector<64x1xf32>
    %39 = arith.mulf %37, %38 : vector<64x1xf32>
    %40 = vector.extract_strided_slice %36 {offsets = [0, 1], sizes = [64, 1], strides = [1, 1]} : vector<64x2xf32> to vector<64x1xf32>
    %cst_15 = arith.constant 0.001953125 : f32
    %41 = vector.broadcast %cst_15 : f32 to vector<64x1xf32>
    %42 = arith.mulf %40, %41 : vector<64x1xf32>
    %43 = arith.mulf %39, %39 : vector<64x1xf32>
    %44 = arith.subf %42, %43 : vector<64x1xf32>
    %cst_16 = arith.constant 9.99999974E-6 : f32
    %45 = vector.broadcast %cst_16 : f32 to vector<64x1xf32>
    %46 = arith.addf %44, %45 : vector<64x1xf32>
    %47 = math.rsqrt %46 : vector<64x1xf32>
    %48 = vector.broadcast %39 : vector<64x1xf32> to vector<64x256xf32>
    %49 = arith.subf %7, %48 : vector<64x256xf32>
    %50 = arith.mulf %47, %4 : vector<64x1xf32>
    %51 = vector.broadcast %50 : vector<64x1xf32> to vector<64x256xf32>
    %52 = arith.mulf %49, %51 : vector<64x256xf32>
    %53 = vector.broadcast %5 : vector<64x1xf32> to vector<64x256xf32>
    %54 = arith.addf %52, %53 : vector<64x256xf32>
    %cst_17 = arith.constant 0.000000e+00 : f32
    %55 = vector.broadcast %cst_17 : f32 to vector<64x256xf32>
    %56 = arith.maximumf %54, %55 : vector<64x256xf32>
    %57 = tpu.iota {dimensions = array<i32: 1>} : vector<64x256xi32>
    %c256_i32 = arith.constant 256 : i32
    %c0_i32_18 = arith.constant 0 : i32
    %58 = arith.cmpi eq, %c256_i32, %c0_i32_18 : i32
    %c1_i32_19 = arith.constant 1 : i32
    %59 = arith.select %58, %c1_i32_19, %c256_i32 : i32
    %60 = vector.broadcast %59 : i32 to vector<64x256xi32>
    %61 = arith.remsi %57, %60 : vector<64x256xi32>
    %c0_i32_20 = arith.constant 0 : i32
    %62 = vector.broadcast %c0_i32_20 : i32 to vector<64x256xi32>
    %63 = arith.cmpi ne, %61, %62 : vector<64x256xi32>
    %c0_i32_21 = arith.constant 0 : i32
    %64 = vector.broadcast %c0_i32_21 : i32 to vector<64x256xi32>
    %65 = arith.cmpi slt, %61, %64 : vector<64x256xi32>
    %c0_i32_22 = arith.constant 0 : i32
    %66 = arith.cmpi slt, %59, %c0_i32_22 : i32
    %67 = vector.broadcast %66 : i1 to vector<64x256xi1>
    %68 = vector.broadcast %67 : vector<64x256xi1> to vector<64x256xi1>
    %69 = arith.xori %65, %68 : vector<64x256xi1>
    %70 = arith.andi %69, %63 : vector<64x256xi1>
    %71 = vector.broadcast %59 : i32 to vector<64x256xi32>
    %72 = arith.addi %61, %71 : vector<64x256xi32>
    %73 = arith.select %70, %72, %61 : vector<64x256xi1>, vector<64x256xi32>
    %c16_i32 = arith.constant 16 : i32
    %74 = vector.broadcast %c16_i32 : i32 to vector<64x256xi32>
    %75 = arith.cmpi slt, %73, %74 : vector<64x256xi32>
    %c256_i32_23 = arith.constant 256 : i32
    %c0_i32_24 = arith.constant 0 : i32
    %76 = arith.cmpi eq, %c256_i32_23, %c0_i32_24 : i32
    %c1_i32_25 = arith.constant 1 : i32
    %77 = arith.select %76, %c1_i32_25, %c256_i32_23 : i32
    %78 = vector.broadcast %77 : i32 to vector<64x256xi32>
    %79 = arith.remsi %57, %78 : vector<64x256xi32>
    %c0_i32_26 = arith.constant 0 : i32
    %80 = vector.broadcast %c0_i32_26 : i32 to vector<64x256xi32>
    %81 = arith.cmpi ne, %79, %80 : vector<64x256xi32>
    %c0_i32_27 = arith.constant 0 : i32
    %82 = vector.broadcast %c0_i32_27 : i32 to vector<64x256xi32>
    %83 = arith.cmpi slt, %79, %82 : vector<64x256xi32>
    %c0_i32_28 = arith.constant 0 : i32
    %84 = arith.cmpi slt, %77, %c0_i32_28 : i32
    %85 = vector.broadcast %84 : i1 to vector<64x256xi1>
    %86 = vector.broadcast %85 : vector<64x256xi1> to vector<64x256xi1>
    %87 = arith.xori %83, %86 : vector<64x256xi1>
    %88 = arith.andi %87, %81 : vector<64x256xi1>
    %89 = vector.broadcast %77 : i32 to vector<64x256xi32>
    %90 = arith.addi %79, %89 : vector<64x256xi32>
    %91 = arith.select %88, %90, %79 : vector<64x256xi1>, vector<64x256xi32>
    %c240_i32 = arith.constant 240 : i32
    %92 = vector.broadcast %c240_i32 : i32 to vector<64x256xi32>
    %93 = arith.cmpi sge, %91, %92 : vector<64x256xi32>
    %c16_i32_29 = arith.constant 16 : i32
    %c0_i32_30 = arith.constant 0 : i32
    %94 = arith.cmpi eq, %c16_i32_29, %c0_i32_30 : i32
    %c1_i32_31 = arith.constant 1 : i32
    %95 = arith.select %94, %c1_i32_31, %c16_i32_29 : i32
    %96 = vector.broadcast %95 : i32 to vector<64x256xi32>
    %97 = arith.remsi %57, %96 : vector<64x256xi32>
    %c0_i32_32 = arith.constant 0 : i32
    %98 = vector.broadcast %c0_i32_32 : i32 to vector<64x256xi32>
    %99 = arith.cmpi ne, %97, %98 : vector<64x256xi32>
    %c0_i32_33 = arith.constant 0 : i32
    %100 = vector.broadcast %c0_i32_33 : i32 to vector<64x256xi32>
    %101 = arith.cmpi slt, %97, %100 : vector<64x256xi32>
    %c0_i32_34 = arith.constant 0 : i32
    %102 = arith.cmpi slt, %95, %c0_i32_34 : i32
    %103 = vector.broadcast %102 : i1 to vector<64x256xi1>
    %104 = vector.broadcast %103 : vector<64x256xi1> to vector<64x256xi1>
    %105 = arith.xori %101, %104 : vector<64x256xi1>
    %106 = arith.andi %105, %99 : vector<64x256xi1>
    %107 = vector.broadcast %95 : i32 to vector<64x256xi32>
    %108 = arith.addi %97, %107 : vector<64x256xi32>
    %109 = arith.select %106, %108, %97 : vector<64x256xi1>, vector<64x256xi32>
    %c0_i32_35 = arith.constant 0 : i32
    %110 = vector.broadcast %c0_i32_35 : i32 to vector<64x256xi32>
    %111 = arith.cmpi eq, %109, %110 : vector<64x256xi32>
    %c16_i32_36 = arith.constant 16 : i32
    %c0_i32_37 = arith.constant 0 : i32
    %112 = arith.cmpi eq, %c16_i32_36, %c0_i32_37 : i32
    %c1_i32_38 = arith.constant 1 : i32
    %113 = arith.select %112, %c1_i32_38, %c16_i32_36 : i32
    %114 = vector.broadcast %113 : i32 to vector<64x256xi32>
    %115 = arith.remsi %57, %114 : vector<64x256xi32>
    %c0_i32_39 = arith.constant 0 : i32
    %116 = vector.broadcast %c0_i32_39 : i32 to vector<64x256xi32>
    %117 = arith.cmpi ne, %115, %116 : vector<64x256xi32>
    %c0_i32_40 = arith.constant 0 : i32
    %118 = vector.broadcast %c0_i32_40 : i32 to vector<64x256xi32>
    %119 = arith.cmpi slt, %115, %118 : vector<64x256xi32>
    %c0_i32_41 = arith.constant 0 : i32
    %120 = arith.cmpi slt, %113, %c0_i32_41 : i32
    %121 = vector.broadcast %120 : i1 to vector<64x256xi1>
    %122 = vector.broadcast %121 : vector<64x256xi1> to vector<64x256xi1>
    %123 = arith.xori %119, %122 : vector<64x256xi1>
    %124 = arith.andi %123, %117 : vector<64x256xi1>
    %125 = vector.broadcast %113 : i32 to vector<64x256xi32>
    %126 = arith.addi %115, %125 : vector<64x256xi32>
    %127 = arith.select %124, %126, %115 : vector<64x256xi1>, vector<64x256xi32>
    %c15_i32 = arith.constant 15 : i32
    %128 = vector.broadcast %c15_i32 : i32 to vector<64x256xi32>
    %129 = arith.cmpi eq, %127, %128 : vector<64x256xi32>
    %c16_i32_42 = arith.constant 16 : i32
    %130 = tpu.dynamic_rotate %56 by %c16_i32_42 dim 1 : vector<64x256xf32>, i32 -> vector<64x256xf32>
    %131 = arith.select %75, %56, %130 : vector<64x256xi1>, vector<64x256xf32>
    %c240_i32_43 = arith.constant 240 : i32
    %132 = tpu.dynamic_rotate %56 by %c240_i32_43 dim 1 : vector<64x256xf32>, i32 -> vector<64x256xf32>
    %133 = arith.select %93, %56, %132 : vector<64x256xi1>, vector<64x256xf32>
    %cst_44 = arith.constant 7.500000e-01 : f32
    %134 = vector.broadcast %cst_44 : f32 to vector<64x256xf32>
    %135 = arith.mulf %134, %56 : vector<64x256xf32>
    %cst_45 = arith.constant 2.500000e-01 : f32
    %136 = vector.broadcast %cst_45 : f32 to vector<64x256xf32>
    %137 = arith.mulf %136, %131 : vector<64x256xf32>
    %138 = arith.addf %135, %137 : vector<64x256xf32>
    %cst_46 = arith.constant 7.500000e-01 : f32
    %139 = vector.broadcast %cst_46 : f32 to vector<64x256xf32>
    %140 = arith.mulf %139, %56 : vector<64x256xf32>
    %cst_47 = arith.constant 2.500000e-01 : f32
    %141 = vector.broadcast %cst_47 : f32 to vector<64x256xf32>
    %142 = arith.mulf %141, %133 : vector<64x256xf32>
    %143 = arith.addf %140, %142 : vector<64x256xf32>
    %c1_i32_48 = arith.constant 1 : i32
    %144 = tpu.dynamic_rotate %138 by %c1_i32_48 dim 1 : vector<64x256xf32>, i32 -> vector<64x256xf32>
    %145 = arith.select %111, %138, %144 : vector<64x256xi1>, vector<64x256xf32>
    %c255_i32 = arith.constant 255 : i32
    %146 = tpu.dynamic_rotate %138 by %c255_i32 dim 1 : vector<64x256xf32>, i32 -> vector<64x256xf32>
    %147 = arith.select %129, %138, %146 : vector<64x256xi1>, vector<64x256xf32>
    %cst_49 = arith.constant 7.500000e-01 : f32
    %148 = vector.broadcast %cst_49 : f32 to vector<64x256xf32>
    %149 = arith.mulf %148, %138 : vector<64x256xf32>
    %cst_50 = arith.constant 2.500000e-01 : f32
    %150 = vector.broadcast %cst_50 : f32 to vector<64x256xf32>
    %151 = arith.mulf %150, %145 : vector<64x256xf32>
    %152 = arith.addf %149, %151 : vector<64x256xf32>
    %c0_51 = arith.constant 0 : index
    %c0_52 = arith.constant 0 : index
    %c0_53 = arith.constant 0 : index
    %153 = vector.load %arg4[%c0_51, %c0_52, %c0_53] : memref<4x64x256xf32, #tpu.memory_space<vmem>>, vector<1x64x256xf32>
    %154 = vector.shape_cast %153 : vector<1x64x256xf32> to vector<64x256xf32>
    %155 = vector.shape_cast %152 : vector<64x256xf32> to vector<1x64x256xf32>
    tpu.vector_store %arg4[%c0_51, %c0_52, %c0_53], %155 {strides = array<i32>} : memref<4x64x256xf32, #tpu.memory_space<vmem>>, vector<1x64x256xf32>,
    %cst_54 = arith.constant 7.500000e-01 : f32
    %156 = vector.broadcast %cst_54 : f32 to vector<64x256xf32>
    %157 = arith.mulf %156, %138 : vector<64x256xf32>
    %cst_55 = arith.constant 2.500000e-01 : f32
    %158 = vector.broadcast %cst_55 : f32 to vector<64x256xf32>
    %159 = arith.mulf %158, %147 : vector<64x256xf32>
    %160 = arith.addf %157, %159 : vector<64x256xf32>
    %c1_56 = arith.constant 1 : index
    %c0_57 = arith.constant 0 : index
    %c0_58 = arith.constant 0 : index
    %161 = vector.load %arg4[%c1_56, %c0_57, %c0_58] : memref<4x64x256xf32, #tpu.memory_space<vmem>>, vector<1x64x256xf32>
    %162 = vector.shape_cast %161 : vector<1x64x256xf32> to vector<64x256xf32>
    %163 = vector.shape_cast %160 : vector<64x256xf32> to vector<1x64x256xf32>
    tpu.vector_store %arg4[%c1_56, %c0_57, %c0_58], %163 {strides = array<i32>} : memref<4x64x256xf32, #tpu.memory_space<vmem>>, vector<1x64x256xf32>,
    %c1_i32_59 = arith.constant 1 : i32
    %164 = tpu.dynamic_rotate %143 by %c1_i32_59 dim 1 : vector<64x256xf32>, i32 -> vector<64x256xf32>
    %165 = arith.select %111, %143, %164 : vector<64x256xi1>, vector<64x256xf32>
    %c255_i32_60 = arith.constant 255 : i32
    %166 = tpu.dynamic_rotate %143 by %c255_i32_60 dim 1 : vector<64x256xf32>, i32 -> vector<64x256xf32>
    %167 = arith.select %129, %143, %166 : vector<64x256xi1>, vector<64x256xf32>
    %cst_61 = arith.constant 7.500000e-01 : f32
    %168 = vector.broadcast %cst_61 : f32 to vector<64x256xf32>
    %169 = arith.mulf %168, %143 : vector<64x256xf32>
    %cst_62 = arith.constant 2.500000e-01 : f32
    %170 = vector.broadcast %cst_62 : f32 to vector<64x256xf32>
    %171 = arith.mulf %170, %165 : vector<64x256xf32>
    %172 = arith.addf %169, %171 : vector<64x256xf32>
    %c2_63 = arith.constant 2 : index
    %c0_64 = arith.constant 0 : index
    %c0_65 = arith.constant 0 : index
    %173 = vector.load %arg4[%c2_63, %c0_64, %c0_65] : memref<4x64x256xf32, #tpu.memory_space<vmem>>, vector<1x64x256xf32>
    %174 = vector.shape_cast %173 : vector<1x64x256xf32> to vector<64x256xf32>
    %175 = vector.shape_cast %172 : vector<64x256xf32> to vector<1x64x256xf32>
    tpu.vector_store %arg4[%c2_63, %c0_64, %c0_65], %175 {strides = array<i32>} : memref<4x64x256xf32, #tpu.memory_space<vmem>>, vector<1x64x256xf32>,
    %cst_66 = arith.constant 7.500000e-01 : f32
    %176 = vector.broadcast %cst_66 : f32 to vector<64x256xf32>
    %177 = arith.mulf %176, %143 : vector<64x256xf32>
    %cst_67 = arith.constant 2.500000e-01 : f32
    %178 = vector.broadcast %cst_67 : f32 to vector<64x256xf32>
    %179 = arith.mulf %178, %167 : vector<64x256xf32>
    %180 = arith.addf %177, %179 : vector<64x256xf32>
    %c3 = arith.constant 3 : index
    %c0_68 = arith.constant 0 : index
    %c0_69 = arith.constant 0 : index
    %181 = vector.load %arg4[%c3, %c0_68, %c0_69] : memref<4x64x256xf32, #tpu.memory_space<vmem>>, vector<1x64x256xf32>
    %182 = vector.shape_cast %181 : vector<1x64x256xf32> to vector<64x256xf32>
    %183 = vector.shape_cast %180 : vector<64x256xf32> to vector<1x64x256xf32>
    tpu.vector_store %arg4[%c3, %c0_68, %c0_69], %183 {strides = array<i32>} : memref<4x64x256xf32, #tpu.memory_space<vmem>>, vector<1x64x256xf32>,
    return
  }
  func.func @transform_0(%arg0: i32) -> (i32, i32) {
    %c0_i32 = arith.constant 0 : i32
    %c0_i32_0 = arith.constant 0 : i32
    return %c0_i32, %arg0 : i32, i32
  }
  func.func @transform_1(%arg0: i32) -> (i32, i32) {
    %c0_i32 = arith.constant 0 : i32
    %c0_i32_0 = arith.constant 0 : i32
    %c0_i32_1 = arith.constant 0 : i32
    return %c0_i32, %c0_i32_0 : i32, i32
  }
  func.func @transform_2(%arg0: i32) -> (i32, i32) {
    %c0_i32 = arith.constant 0 : i32
    %c0_i32_0 = arith.constant 0 : i32
    %c0_i32_1 = arith.constant 0 : i32
    return %c0_i32, %c0_i32_0 : i32, i32
  }
  func.func @transform_3(%arg0: i32) -> (i32, i32, i32) {
    %c0_i32 = arith.constant 0 : i32
    %c0_i32_0 = arith.constant 0 : i32
    %c0_i32_1 = arith.constant 0 : i32
    return %c0_i32, %c0_i32_0, %arg0 : i32, i32, i32
  }
}

</mosaic_0001>

<llo_original>
// kernel: upsample_block_forward.1
$region0: #{upsample_block_forward.1}
  #allocation0 [shape = 'u32[]', space=smem, size = 0x4, offset = 0x4, fixed_abs, tag = 'smem constant byte address 0x4 - core index']
  #allocation1 [shape = 'u32[72,128]{1,0:T(1,128)}', space=vmem, size = 0x9000, scoped, tag = 'internal scratch']
  %s0 = inlined_call_operand.vmem [shape: bf16[144,512], index: 0, kind: input, shape index: {}]
  %s1 = inlined_call_operand.vmem [shape: bf16[64,144], index: 1, kind: input, shape index: {}]
  %s2 = inlined_call_operand.vmem [shape: f32[64,3], index: 2, kind: input, shape index: {}]
  %s3 = inlined_call_operand.vmem [shape: f32[4,64,512], index: 3, kind: output, shape index: {}]
  %s4 = sld [smem:[#allocation0]]
  $region102: #{upsample_block_forward.1} parent=0
    _
  %s6 = ssub.s32 1, %s4
  %s7 = scalar_select 0, %s6, %s4
  $region1: #{upsample_block_forward.1} parent=0
    #allocation2 [shape = 'u8[147456]{0}', space=vmem, size = 0x24000, scoped, tag = 'input window, operand 0']
    #allocation3 [shape = 'u8[524288]{0}', space=vmem, size = 0x80000, scoped, tag = 'output window, operand 0']
    loop: start=0, step=1, limit=4
    $region2: #{upsample_block_forward.1} parent=1 // loop_pre_header
      _
    $region3: #{upsample_block_forward.1} parent=1 // loop_header
      %s9 = sphi 0, %s13
      %p10 = scmp.ge.s32.totalorder %s9, 4
      %s19 = sphi 0, %s21
      %s22 = sphi 0, %s19
      %s23 = sphi 0, %s22
      %s39 = sphi 0, %s23
      %s43 = sphi 0, %s43
      %s45 = sphi 0, %s43
      %s46 = sphi 0, %s45
      %s60 = sphi 0, %s46
      %s64 = sphi 0, %s64
      %s66 = sphi 0, %s64
      %s67 = sphi 0, %s66
      %s81 = sphi 0, %s67
      %s87 = sphi 0, %s89
      %s90 = sphi 0, %s87
      %s91 = sphi 0, %s90
      %s107 = sphi 0, %s91
    $region4: #{upsample_block_forward.1} parent=1 // loop_header_branch
      %12 = sbr.rel (%p10) target = $region8
    $region5: #{upsample_block_forward.1} parent=1 // loop_body
      %s14 = ssub.s32 %s9, 1
      %s15 = ssub.s32 %s9, 2
      %s16 = sadd.s32 %s9, 1
      %s17 = ssub.s32 %s9, %s16
      %p18 = scmp.eq.s32.totalorder %s17, 0
      %s20 = sadd.s32 %s19, 1
      %s21 = scalar_select %p18, %s19, %s20
      %p24 = pneg %p18
      %p25 = scmp.eq.s32.totalorder %s9, 1
      %p26 = por %p24, %p25
      %p27 = scmp.ne.s32.totalorder %s19, %s22
      %p28 = scmp.eq.s32.totalorder %s9, 0
      %p29 = por %p27, %p28
      %p30 = scmp.ne.s32.totalorder %s19, %s22
      %p31 = scmp.eq.s32.totalorder %s14, 1
      %p32 = por %p30, %p31
      %p33 = scmp.ne.s32.totalorder %s22, %s23
      %p34 = scmp.eq.s32.totalorder %s14, 0
      %p35 = por %p33, %p34
      %p36 = scmp.ne.s32.totalorder %s22, %s23
      %p37 = scmp.eq.s32.totalorder %s15, 1
      %p38 = por %p36, %p37
      %p40 = scmp.ne.s32.totalorder %s23, %s39
      %p41 = scmp.eq.s32.totalorder %s15, 0
      %p42 = por %p40, %p41
      %s44 = sadd.s32 %s43, 1
      %p47 = scmp.eq.s32.totalorder %s9, 1
      %p48 = scmp.ne.s32.totalorder %s43, %s45
      %p49 = scmp.eq.s32.totalorder %s9, 0
      %p50 = por %p48, %p49
      %p51 = scmp.ne.s32.totalorder %s43, %s45
      %p52 = scmp.eq.s32.totalorder %s14, 1
      %p53 = por %p51, %p52
      %p54 = scmp.ne.s32.totalorder %s45, %s46
      %p55 = scmp.eq.s32.totalorder %s14, 0
      %p56 = por %p54, %p55
      %p57 = scmp.ne.s32.totalorder %s45, %s46
      %p58 = scmp.eq.s32.totalorder %s15, 1
      %p59 = por %p57, %p58
      %p61 = scmp.ne.s32.totalorder %s46, %s60
      %p62 = scmp.eq.s32.totalorder %s15, 0
      %p63 = por %p61, %p62
      %s65 = sadd.s32 %s64, 1
      %p68 = scmp.eq.s32.totalorder %s9, 1
      %p69 = scmp.ne.s32.totalorder %s64, %s66
      %p70 = scmp.eq.s32.totalorder %s9, 0
      %p71 = por %p69, %p70
      %p72 = scmp.ne.s32.totalorder %s64, %s66
      %p73 = scmp.eq.s32.totalorder %s14, 1
      %p74 = por %p72, %p73
      %p75 = scmp.ne.s32.totalorder %s66, %s67
      %p76 = scmp.eq.s32.totalorder %s14, 0
      %p77 = por %p75, %p76
      %p78 = scmp.ne.s32.totalorder %s66, %s67
      %p79 = scmp.eq.s32.totalorder %s15, 1
      %p80 = por %p78, %p79
      %p82 = scmp.ne.s32.totalorder %s67, %s81
      %p83 = scmp.eq.s32.totalorder %s15, 0
      %p84 = por %p82, %p83
      %s85 = ssub.s32 %s9, %s16
      %p86 = scmp.eq.s32.totalorder %s85, 0
      %s88 = sadd.s32 %s87, 1
      %s89 = scalar_select %p86, %s87, %s88
      %p92 = pneg %p86
      %p93 = scmp.eq.s32.totalorder %s9, 1
      %p94 = por %p92, %p93
      %p95 = scmp.ne.s32.totalorder %s87, %s90
      %p96 = scmp.eq.s32.totalorder %s9, 0
      %p97 = por %p95, %p96
      %p98 = scmp.ne.s32.totalorder %s87, %s90
      %p99 = scmp.eq.s32.totalorder %s14, 1
      %p100 = por %p98, %p99
      %p101 = scmp.ne.s32.totalorder %s90, %s91
      %p102 = scmp.eq.s32.totalorder %s14, 0
      %p103 = por %p101, %p102
      %p104 = scmp.ne.s32.totalorder %s90, %s91
      %p105 = scmp.eq.s32.totalorder %s15, 1
      %p106 = por %p104, %p105
      %p108 = scmp.ne.s32.totalorder %s91, %s107
      %p109 = scmp.eq.s32.totalorder %s15, 0
      %p110 = por %p108, %p109
      %p111 = scmp.le.s32.totalorder 1, %s9
      %p112 = scmp.lt.s32.totalorder %s9, 3
      %p113 = pnand %p111, %p112
      %p114 = pneg %p113
      // Predicated region
      $region9: #{upsample_block_forward.1} parent=5 // pred_check
        _
      $region10: #{upsample_block_forward.1} parent=5 // pred_check_branch
        %116 = sbr.rel (%p113) target = $region12
      $region11: #{upsample_block_forward.1} parent=5 // pred_region
        %s117 = ssub.s32 %s9, 1
        // Predicated region
        $region13: #{upsample_block_forward.1} parent=11 // pred_check
          %p118 = pneg %p56
        $region14: #{upsample_block_forward.1} parent=11 // pred_check_branch
          %120 = sbr.rel (%p118) target = $region16
        $region15: #{upsample_block_forward.1} parent=11 // pred_region
          _
        $region16: #{upsample_block_forward.1} parent=11 // pred_fallthru
          _
        // Predicated region
        $region17: #{upsample_block_forward.1} parent=11 // pred_check
          %p121 = pneg %p77
        $region18: #{upsample_block_forward.1} parent=11 // pred_check_branch
          %123 = sbr.rel (%p121) target = $region20
        $region19: #{upsample_block_forward.1} parent=11 // pred_region
          _
        $region20: #{upsample_block_forward.1} parent=11 // pred_fallthru
          _
      $region12: #{upsample_block_forward.1} parent=5 // pred_fallthru
        _
      %p124 = scmp.lt.s32.totalorder %s9, 2
      // Predicated region
      $region21: #{upsample_block_forward.1} parent=5 // pred_check
        %p125 = pneg %p124
      $region22: #{upsample_block_forward.1} parent=5 // pred_check_branch
        %127 = sbr.rel (%p125) target = $region24
      $region23: #{upsample_block_forward.1} parent=5 // pred_region
        // Predicated region
        $region25: #{upsample_block_forward.1} parent=23 // pred_check
          %p128 = pneg %p29
        $region26: #{upsample_block_forward.1} parent=23 // pred_check_branch
          %130 = sbr.rel (%p128) target = $region28
        $region27: #{upsample_block_forward.1} parent=23 // pred_region
          %s131 = sand.u32 %s19, 1
          %s132 = sand.u32 %s19, 1
          %s133 = smul.addr %s132, 144
          %s134 = scalar_lea.vmem [#allocation2], %s133
          %s135 = smul.u32 2, %s9
          %s136 = smul.addr %s135, 4
          %s137 = scalar_lea.vmem %s0, %s136
          // Predicated region
          $region29: #{upsample_block_forward.1} parent=27 // pred_check
            _
          $region30: #{upsample_block_forward.1} parent=27 // pred_check_branch
            %139 = sbr.rel (0) target = $region32
          $region31: #{upsample_block_forward.1} parent=27 // pred_region
            // Predicated region
            $region33: #{upsample_block_forward.1} parent=31 // pred_check
              _
            $region34: #{upsample_block_forward.1} parent=31 // pred_check_branch
              %141 = sbr.rel (0) target = $region36
            $region35: #{upsample_block_forward.1} parent=31 // pred_region
              // Predicated region
              $region48: #{upsample_block_forward.1} parent=35 // pred_check
                _
              $region49: #{upsample_block_forward.1} parent=35 // pred_check_branch
                %191 = sbr.rel (0) target = $region51
              $region50: #{upsample_block_forward.1} parent=35 // pred_region
                loop: start=0, step=1, limit=1
                $region52: #{upsample_block_forward.1} parent=50 // loop_pre_header
                  _
                $region53: #{upsample_block_forward.1} parent=50 // loop_header
                  %s193 = sphi 0, %s197
                  %p194 = scmp.ge.s32.totalorder %s193, 1
                  %s198 = sphi %s137, %s137
                  %s199 = sphi %s134, %s134
                $region54: #{upsample_block_forward.1} parent=50 // loop_header_branch
                  %196 = sbr.rel (%p194) target = $region58
                $region55: #{upsample_block_forward.1} parent=50 // loop_body
                  %v200 = vld [vmem:[%s198] sm:$0xff]
                  %201 = vst [vmem:[%s199] sm:$0xff] %v200
                  %v202 = vld [vmem:[%s198 + $0x10] sm:$0xff]
                  %203 = vst [vmem:[%s199 + $0x8] sm:$0xff] %v202
                  %v204 = vld [vmem:[%s198 + $0x20] sm:$0xff]
                  %205 = vst [vmem:[%s199 + $0x10] sm:$0xff] %v204
                  %v206 = vld [vmem:[%s198 + $0x30] sm:$0xff]
                  %207 = vst [vmem:[%s199 + $0x18] sm:$0xff] %v206
                  %v208 = vld [vmem:[%s198 + $0x40] sm:$0xff]
                  %209 = vst [vmem:[%s199 + $0x20] sm:$0xff] %v208
                  %v210 = vld [vmem:[%s198 + $0x50] sm:$0xff]
                  %211 = vst [vmem:[%s199 + $0x28] sm:$0xff] %v210
                  %v212 = vld [vmem:[%s198 + $0x60] sm:$0xff]
                  %213 = vst [vmem:[%s199 + $0x30] sm:$0xff] %v212
                  %v214 = vld [vmem:[%s198 + $0x70] sm:$0xff]
                  %215 = vst [vmem:[%s199 + $0x38] sm:$0xff] %v214
                  %v216 = vld [vmem:[%s198 + $0x80] sm:$0xff]
                  %217 = vst [vmem:[%s199 + $0x40] sm:$0xff] %v216
                  %v218 = vld [vmem:[%s198 + $0x90] sm:$0xff]
                  %219 = vst [vmem:[%s199 + $0x48] sm:$0xff] %v218
                  %v220 = vld [vmem:[%s198 + $0xa0] sm:$0xff]
                  %221 = vst [vmem:[%s199 + $0x50] sm:$0xff] %v220
                  %v222 = vld [vmem:[%s198 + $0xb0] sm:$0xff]
                  %223 = vst [vmem:[%s199 + $0x58] sm:$0xff] %v222
                  %v224 = vld [vmem:[%s198 + $0xc0] sm:$0xff]
                  %225 = vst [vmem:[%s199 + $0x60] sm:$0xff] %v224
                  %v226 = vld [vmem:[%s198 + $0xd0] sm:$0xff]
                  %227 = vst [vmem:[%s199 + $0x68] sm:$0xff] %v226
                  %v228 = vld [vmem:[%s198 + $0xe0] sm:$0xff]
                  %229 = vst [vmem:[%s199 + $0x70] sm:$0xff] %v228
                  %v230 = vld [vmem:[%s198 + $0xf0] sm:$0xff]
                  %231 = vst [vmem:[%s199 + $0x78] sm:$0xff] %v230
                  %v232 = vld [vmem:[%s198 + $0x100] sm:$0xff]
                  %233 = vst [vmem:[%s199 + $0x80] sm:$0xff] %v232
                  %v234 = vld [vmem:[%s198 + $0x110] sm:$0xff]
                  %235 = vst [vmem:[%s199 + $0x88] sm:$0xff] %v234
                $region56: #{upsample_block_forward.1} parent=50 // loop_footer
                  %s197 = sadd.s32 1, %s193
                $region57: #{upsample_block_forward.1} parent=50 // loop_footer_branch
                  %192 = sbr.rel target = $region53
                $region58: #{upsample_block_forward.1} parent=50 // loop_exit
                  _
              $region51: #{upsample_block_forward.1} parent=35 // pred_fallthru
                _
              // Predicated region
              $region59: #{upsample_block_forward.1} parent=35 // pred_check
                _
              $region60: #{upsample_block_forward.1} parent=35 // pred_check_branch
                %237 = sbr.rel target = $region62
              $region61: #{upsample_block_forward.1} parent=35 // pred_region
                _
              $region62: #{upsample_block_forward.1} parent=35 // pred_fallthru
                _
            $region36: #{upsample_block_forward.1} parent=31 // pred_fallthru
              _
            // Predicated region
            $region37: #{upsample_block_forward.1} parent=31 // pred_check
              _
            $region38: #{upsample_block_forward.1} parent=31 // pred_check_branch
              %143 = sbr.rel target = $region40
            $region39: #{upsample_block_forward.1} parent=31 // pred_region
              %s145 = ssub.s32 256, 1
              loop: start=0, step=1, limit=1
              $region41: #{upsample_block_forward.1} parent=39 // loop_pre_header
                _
              $region42: #{upsample_block_forward.1} parent=39 // loop_header
                %s147 = sphi 0, %s151
                %p148 = scmp.ge.s32.totalorder %s147, 1
                %s152 = sphi %s137, %s137
                %s153 = sphi %s134, %s134
              $region43: #{upsample_block_forward.1} parent=39 // loop_header_branch
                %150 = sbr.rel (%p148) target = $region47
              $region44: #{upsample_block_forward.1} parent=39 // loop_body
                %v154 = vld [vmem:[%s152] sm:%s145]
                %155 = vst [vmem:[%s153] sm:%s145] %v154
                %v156 = vld [vmem:[%s152 + $0x10] sm:%s145]
                %157 = vst [vmem:[%s153 + $0x8] sm:%s145] %v156
                %v158 = vld [vmem:[%s152 + $0x20] sm:%s145]
                %159 = vst [vmem:[%s153 + $0x10] sm:%s145] %v158
                %v160 = vld [vmem:[%s152 + $0x30] sm:%s145]
                %161 = vst [vmem:[%s153 + $0x18] sm:%s145] %v160
                %v162 = vld [vmem:[%s152 + $0x40] sm:%s145]
                %163 = vst [vmem:[%s153 + $0x20] sm:%s145] %v162
                %v164 = vld [vmem:[%s152 + $0x50] sm:%s145]
                %165 = vst [vmem:[%s153 + $0x28] sm:%s145] %v164
                %v166 = vld [vmem:[%s152 + $0x60] sm:%s145]
                %167 = vst [vmem:[%s153 + $0x30] sm:%s145] %v166
                %v168 = vld [vmem:[%s152 + $0x70] sm:%s145]
                %169 = vst [vmem:[%s153 + $0x38] sm:%s145] %v168
                %v170 = vld [vmem:[%s152 + $0x80] sm:%s145]
                %171 = vst [vmem:[%s153 + $0x40] sm:%s145] %v170
                %v172 = vld [vmem:[%s152 + $0x90] sm:%s145]
                %173 = vst [vmem:[%s153 + $0x48] sm:%s145] %v172
                %v174 = vld [vmem:[%s152 + $0xa0] sm:%s145]
                %175 = vst [vmem:[%s153 + $0x50] sm:%s145] %v174
                %v176 = vld [vmem:[%s152 + $0xb0] sm:%s145]
                %177 = vst [vmem:[%s153 + $0x58] sm:%s145] %v176
                %v178 = vld [vmem:[%s152 + $0xc0] sm:%s145]
                %179 = vst [vmem:[%s153 + $0x60] sm:%s145] %v178
                %v180 = vld [vmem:[%s152 + $0xd0] sm:%s145]
                %181 = vst [vmem:[%s153 + $0x68] sm:%s145] %v180
                %v182 = vld [vmem:[%s152 + $0xe0] sm:%s145]
                %183 = vst [vmem:[%s153 + $0x70] sm:%s145] %v182
                %v184 = vld [vmem:[%s152 + $0xf0] sm:%s145]
                %185 = vst [vmem:[%s153 + $0x78] sm:%s145] %v184
                %v186 = vld [vmem:[%s152 + $0x100] sm:%s145]
                %187 = vst [vmem:[%s153 + $0x80] sm:%s145] %v186
                %v188 = vld [vmem:[%s152 + $0x110] sm:%s145]
                %189 = vst [vmem:[%s153 + $0x88] sm:%s145] %v188
              $region45: #{upsample_block_forward.1} parent=39 // loop_footer
                %s151 = sadd.s32 1, %s147
              $region46: #{upsample_block_forward.1} parent=39 // loop_footer_branch
                %146 = sbr.rel target = $region42
              $region47: #{upsample_block_forward.1} parent=39 // loop_exit
                _
            $region40: #{upsample_block_forward.1} parent=31 // pred_fallthru
              _
          $region32: #{upsample_block_forward.1} parent=27 // pred_fallthru
            _
          %238 = vnop
        $region28: #{upsample_block_forward.1} parent=23 // pred_fallthru
          _
      $region24: #{upsample_block_forward.1} parent=5 // pred_fallthru
        _
      %p239 = scmp.le.s32.totalorder 1, %s9
      %p240 = scmp.lt.s32.totalorder %s9, 3
      %p241 = pnand %p239, %p240
      %p242 = pneg %p241
      // Predicated region
      $region63: #{upsample_block_forward.1} parent=5 // pred_check
        _
      $region64: #{upsample_block_forward.1} parent=5 // pred_check_branch
        %244 = sbr.rel (%p241) target = $region66
      $region65: #{upsample_block_forward.1} parent=5 // pred_region
        %s245 = ssub.s32 %s9, 1
        %s246 = sand.u32 %s22, 1
        %s247 = sand.u32 %s22, 1
        %s248 = smul.addr %s247, 144
        %s249 = scalar_lea.vmem [#allocation2], %s248
        // Predicated region
        $region67: #{upsample_block_forward.1} parent=65 // pred_check
          %p250 = pneg %p35
        $region68: #{upsample_block_forward.1} parent=65 // pred_check_branch
          %252 = sbr.rel (%p250) target = $region70
        $region69: #{upsample_block_forward.1} parent=65 // pred_region
          _
        $region70: #{upsample_block_forward.1} parent=65 // pred_fallthru
          _
        %s253 = sand.u32 %s22, 1
        %s254 = sand.u32 %s22, 1
        %s255 = smul.addr %s254, 144
        %s256 = scalar_lea.vmem [#allocation2], %s255
        %p257 = pneg %p35
        %p258 = pneg %p32
        %p259 = pneg %p56
        %p260 = pneg %p53
        %p261 = pneg %p77
        %p262 = pneg %p74
        %p263 = pneg %p103
        %p264 = pneg %p100
        %s265 = sand.u32 %s90, 1
        %s266 = sand.u32 %s90, 1
        %s267 = smul.addr %s266, 512
        %s268 = scalar_lea.vmem [#allocation3], %s267
        %s269 = smul.u32 2, %s14
        %s270 = smul.u32 2, %s14
        %v272 = vld [vmem:[%s1] sm:$0xff]
        %v273 = vld [vmem:[%s1 + $0x8] sm:$0xff]
        %v274 = vld [vmem:[%s1 + $0x10] sm:$0xff]
        %v275 = vld [vmem:[%s1 + $0x18] sm:$0xff]
        %v276 = vld [vmem:[%s1 + $0x20] sm:$0xff]
        %v277 = vld [vmem:[%s1 + $0x28] sm:$0xff]
        %v278 = vld [vmem:[%s1 + $0x30] sm:$0xff]
        %v279 = vld [vmem:[%s1 + $0x38] sm:$0xff]
        %v280 = vld [vmem:[%s249] sm:$0xff]
        %v281 = vld [vmem:[%s249 + $0x8] sm:$0xff]
        %v282 = vld [vmem:[%s249 + $0x10] sm:$0xff]
        %v283 = vld [vmem:[%s249 + $0x18] sm:$0xff]
        %v284 = vld [vmem:[%s249 + $0x20] sm:$0xff]
        %v285 = vld [vmem:[%s249 + $0x28] sm:$0xff]
        %v286 = vld [vmem:[%s249 + $0x30] sm:$0xff]
        %v287 = vld [vmem:[%s249 + $0x38] sm:$0xff]
        %v288 = vld [vmem:[%s249 + $0x40] sm:$0xff]
        %v289 = vld [vmem:[%s249 + $0x48] sm:$0xff]
        %v290 = vld [vmem:[%s249 + $0x50] sm:$0xff]
        %v291 = vld [vmem:[%s249 + $0x58] sm:$0xff]
        %v292 = vld [vmem:[%s249 + $0x60] sm:$0xff]
        %v293 = vld [vmem:[%s249 + $0x68] sm:$0xff]
        %v294 = vld [vmem:[%s249 + $0x70] sm:$0xff]
        %v295 = vld [vmem:[%s249 + $0x78] sm:$0xff]
        %v296 = vld [vmem:[%s249 + $0x80] sm:$0xff]
        %v297 = vld [vmem:[%s249 + $0x88] sm:$0xff]
        %v298 = vld [vmem:[%s2] sm:$0xff]
        %v299 = vld [vmem:[%s2 + $0x8] sm:$0xff]
        %v300 = vld [vmem:[%s2 + $0x10] sm:$0xff]
        %v301 = vld [vmem:[%s2 + $0x18] sm:$0xff]
        %v302 = vld [vmem:[%s2 + $0x20] sm:$0xff]
        %v303 = vld [vmem:[%s2 + $0x28] sm:$0xff]
        %v304 = vld [vmem:[%s2 + $0x30] sm:$0xff]
        %v305 = vld [vmem:[%s2 + $0x38] sm:$0xff]
        %307 = vset.pattern.permute.xlu0 0
        %308 = vperm.xlu0 %307, %v298
        %v309 = vpop.permute.xlu0 %308
        %312 = vset.pattern.permute.xlu0 0
        %313 = vperm.xlu0 %312, %v299
        %v314 = vpop.permute.xlu0 %313
        %317 = vset.pattern.permute.xlu0 0
        %318 = vperm.xlu0 %317, %v300
        %v319 = vpop.permute.xlu0 %318
        %322 = vset.pattern.permute.xlu0 0
        %323 = vperm.xlu0 %322, %v301
        %v324 = vpop.permute.xlu0 %323
        %327 = vset.pattern.permute.xlu0 0
        %328 = vperm.xlu0 %327, %v302
        %v329 = vpop.permute.xlu0 %328
        %332 = vset.pattern.permute.xlu0 0
        %333 = vperm.xlu0 %332, %v303
        %v334 = vpop.permute.xlu0 %333
        %337 = vset.pattern.permute.xlu0 0
        %338 = vperm.xlu0 %337, %v304
        %v339 = vpop.permute.xlu0 %338
        %342 = vset.pattern.permute.xlu0 0
        %343 = vperm.xlu0 %342, %v305
        %v344 = vpop.permute.xlu0 %343
        %v354 = vunpack.c.l.b16 %v272
        %v355 = vunpack.c.h.b16 %v272
        %v356 = vunpack.c.l.b16 %v273
        %v357 = vunpack.c.h.b16 %v273
        %v358 = vunpack.c.l.b16 %v274
        %v359 = vunpack.c.h.b16 %v274
        %v360 = vunpack.c.l.b16 %v275
        %v361 = vunpack.c.h.b16 %v275
        %v362 = vunpack.c.l.b16 %v276
        %v363 = vunpack.c.h.b16 %v276
        %v364 = vunpack.c.l.b16 %v277
        %v365 = vunpack.c.h.b16 %v277
        %v366 = vunpack.c.l.b16 %v278
        %v367 = vunpack.c.h.b16 %v278
        %v368 = vunpack.c.l.b16 %v279
        %v369 = vunpack.c.h.b16 %v279
        %v370 = vpack.c.b16 %v356, %v354
        %v371 = vpack.c.b16 %v357, %v355
        %v372 = vpack.c.b16 %v360, %v358
        %v373 = vpack.c.b16 %v361, %v359
        %v374 = vpack.c.b16 %v364, %v362
        %v375 = vpack.c.b16 %v365, %v363
        %v376 = vpack.c.b16 %v368, %v366
        %v377 = vpack.c.b16 %v369, %v367
        %v400 = vunpack.c.l.b16 %v280
        %v401 = vunpack.c.h.b16 %v280
        %v402 = vunpack.c.l.b16 %v281
        %v403 = vunpack.c.h.b16 %v281
        %v404 = vunpack.c.l.b16 %v282
        %v405 = vunpack.c.h.b16 %v282
        %v406 = vunpack.c.l.b16 %v283
        %v407 = vunpack.c.h.b16 %v283
        %v408 = vunpack.c.l.b16 %v284
        %v409 = vunpack.c.h.b16 %v284
        %v410 = vunpack.c.l.b16 %v285
        %v411 = vunpack.c.h.b16 %v285
        %v412 = vunpack.c.l.b16 %v286
        %v413 = vunpack.c.h.b16 %v286
        %v414 = vunpack.c.l.b16 %v287
        %v415 = vunpack.c.h.b16 %v287
        %v416 = vunpack.c.l.b16 %v288
        %v417 = vunpack.c.h.b16 %v288
        %v418 = vunpack.c.l.b16 %v289
        %v419 = vunpack.c.h.b16 %v289
        %v420 = vunpack.c.l.b16 %v290
        %v421 = vunpack.c.h.b16 %v290
        %v422 = vunpack.c.l.b16 %v291
        %v423 = vunpack.c.h.b16 %v291
        %v424 = vunpack.c.l.b16 %v292
        %v425 = vunpack.c.h.b16 %v292
        %v426 = vunpack.c.l.b16 %v293
        %v427 = vunpack.c.h.b16 %v293
        %v428 = vunpack.c.l.b16 %v294
        %v429 = vunpack.c.h.b16 %v294
        %v430 = vunpack.c.l.b16 %v295
        %v431 = vunpack.c.h.b16 %v295
        %v432 = vunpack.c.l.b16 %v296
        %v433 = vunpack.c.h.b16 %v296
        %v434 = vunpack.c.l.b16 %v297
        %v435 = vunpack.c.h.b16 %v297
        %v436 = vpack.c.b16 %v402, %v400
        %v437 = vpack.c.b16 %v403, %v401
        %v438 = vpack.c.b16 %v406, %v404
        %v439 = vpack.c.b16 %v407, %v405
        %v440 = vpack.c.b16 %v410, %v408
        %v441 = vpack.c.b16 %v411, %v409
        %v442 = vpack.c.b16 %v414, %v412
        %v443 = vpack.c.b16 %v415, %v413
        %v444 = vpack.c.b16 %v418, %v416
        %v445 = vpack.c.b16 %v419, %v417
        %v446 = vpack.c.b16 %v422, %v420
        %v447 = vpack.c.b16 %v423, %v421
        %v448 = vpack.c.b16 %v426, %v424
        %v449 = vpack.c.b16 %v427, %v425
        %v450 = vpack.c.b16 %v430, %v428
        %v451 = vpack.c.b16 %v431, %v429
        %v452 = vpack.c.b16 %v434, %v432
        %v453 = vpack.c.b16 %v435, %v433
        %vm472 = vcmask 130048
        %v474 = vsel %vm472, %v371, 0
        %v477 = vsel %vm472, %v373, 0
        %v480 = vsel %vm472, %v375, 0
        %v483 = vsel %vm472, %v377, 0
        %485 = vmatpush.bf16.msra.mxu0 %v450
        %486 = vmatpush.bf16.msra.mxu0 %v448
        %487 = vmatpush.bf16.msra.mxu0 %v446
        %488 = vmatpush.bf16.msra.mxu0 %v444
        %489 = vmatpush.bf16.msra.mxu0 %v442
        %490 = vmatpush.bf16.msra.mxu0 %v440
        %491 = vmatpush.bf16.msra.mxu0 %v438
        %492 = vmatpush.bf16.msra.mxu0 %v436
        %493 = vmatmul.bf16.gmra.mxu0 %v370
        %v494 = vpop.f32.mrf.mxu0
        %v495 = vadd.f32 %v309, %v494
        %v496 = vpop.f32.mrf.mxu0
        %v497 = vadd.f32 %v314, %v496
        %498 = vmatmul.bf16.gmra.mxu0 %v372
        %v499 = vpop.f32.mrf.mxu0
        %v500 = vadd.f32 %v319, %v499
        %v501 = vpop.f32.mrf.mxu0
        %v502 = vadd.f32 %v324, %v501
        %503 = vmatmul.bf16.gmra.mxu0 %v374
        %v504 = vpop.f32.mrf.mxu0
        %v505 = vadd.f32 %v329, %v504
        %v506 = vpop.f32.mrf.mxu0
        %v507 = vadd.f32 %v334, %v506
        %508 = vmatmul.bf16.gmra.mxu0 %v376
        %v509 = vpop.f32.mrf.mxu0
        %v510 = vadd.f32 %v339, %v509
        %v511 = vpop.f32.mrf.mxu0
        %v512 = vadd.f32 %v344, %v511
        %513 = vdwg.mxu0
        %514 = vmatpush.bf16.msra.mxu0 0
        %515 = vmatpush.bf16.msra.mxu0 0
        %516 = vmatpush.bf16.msra.mxu0 0
        %517 = vmatpush.bf16.msra.mxu0 0
        %518 = vmatpush.bf16.msra.mxu0 0
        %519 = vmatpush.bf16.msra.mxu0 0
        %520 = vmatpush.bf16.msra.mxu0 0
        %521 = vmatpush.bf16.msra.mxu0 %v452
        %522 = vmatmul.bf16.gmra.mxu0 %v474
        %v523 = vpop.f32.mrf.mxu0
        %v524 = vadd.f32 %v495, %v523
        %v525 = vpop.f32.mrf.mxu0
        %v526 = vadd.f32 %v497, %v525
        %527 = vmatmul.bf16.gmra.mxu0 %v477
        %v528 = vpop.f32.mrf.mxu0
        %v529 = vadd.f32 %v500, %v528
        %v530 = vpop.f32.mrf.mxu0
        %v531 = vadd.f32 %v502, %v530
        %532 = vmatmul.bf16.gmra.mxu0 %v480
        %v533 = vpop.f32.mrf.mxu0
        %v534 = vadd.f32 %v505, %v533
        %v535 = vpop.f32.mrf.mxu0
        %v536 = vadd.f32 %v507, %v535
        %537 = vmatmul.bf16.gmra.mxu0 %v483
        %v538 = vpop.f32.mrf.mxu0
        %v539 = vadd.f32 %v510, %v538
        %v540 = vpop.f32.mrf.mxu0
        %v541 = vadd.f32 %v512, %v540
        %542 = vdwg.mxu0
        %543 = vmatpush.bf16.msra.mxu0 %v451
        %544 = vmatpush.bf16.msra.mxu0 %v449
        %545 = vmatpush.bf16.msra.mxu0 %v447
        %546 = vmatpush.bf16.msra.mxu0 %v445
        %547 = vmatpush.bf16.msra.mxu0 %v443
        %548 = vmatpush.bf16.msra.mxu0 %v441
        %549 = vmatpush.bf16.msra.mxu0 %v439
        %550 = vmatpush.bf16.msra.mxu0 %v437
        %551 = vmatmul.bf16.gmra.mxu0 %v370
        %v552 = vpop.f32.mrf.mxu0
        %v553 = vadd.f32 %v309, %v552
        %v554 = vpop.f32.mrf.mxu0
        %v555 = vadd.f32 %v314, %v554
        %556 = vmatmul.bf16.gmra.mxu0 %v372
        %v557 = vpop.f32.mrf.mxu0
        %v558 = vadd.f32 %v319, %v557
        %v559 = vpop.f32.mrf.mxu0
        %v560 = vadd.f32 %v324, %v559
        %561 = vmatmul.bf16.gmra.mxu0 %v374
        %v562 = vpop.f32.mrf.mxu0
        %v563 = vadd.f32 %v329, %v562
        %v564 = vpop.f32.mrf.mxu0
        %v565 = vadd.f32 %v334, %v564
        %566 = vmatmul.bf16.gmra.mxu0 %v376
        %v567 = vpop.f32.mrf.mxu0
        %v568 = vadd.f32 %v339, %v567
        %v569 = vpop.f32.mrf.mxu0
        %v570 = vadd.f32 %v344, %v569
        %571 = vdwg.mxu0
        %572 = vmatpush.bf16.msra.mxu0 0
        %573 = vmatpush.bf16.msra.mxu0 0
        %574 = vmatpush.bf16.msra.mxu0 0
        %575 = vmatpush.bf16.msra.mxu0 0
        %576 = vmatpush.bf16.msra.mxu0 0
        %577 = vmatpush.bf16.msra.mxu0 0
        %578 = vmatpush.bf16.msra.mxu0 0
        %579 = vmatpush.bf16.msra.mxu0 %v453
        %580 = vmatmul.bf16.gmra.mxu0 %v474
        %v581 = vpop.f32.mrf.mxu0
        %v582 = vadd.f32 %v553, %v581
        %v583 = vpop.f32.mrf.mxu0
        %v584 = vadd.f32 %v555, %v583
        %585 = vmatmul.bf16.gmra.mxu0 %v477
        %v586 = vpop.f32.mrf.mxu0
        %v587 = vadd.f32 %v558, %v586
        %v588 = vpop.f32.mrf.mxu0
        %v589 = vadd.f32 %v560, %v588
        %590 = vmatmul.bf16.gmra.mxu0 %v480
        %v591 = vpop.f32.mrf.mxu0
        %v592 = vadd.f32 %v563, %v591
        %v593 = vpop.f32.mrf.mxu0
        %v594 = vadd.f32 %v565, %v593
        %595 = vmatmul.bf16.gmra.mxu0 %v483
        %v596 = vpop.f32.mrf.mxu0
        %v597 = vadd.f32 %v568, %v596
        %v598 = vpop.f32.mrf.mxu0
        %v599 = vadd.f32 %v570, %v598
        %600 = vdwg.mxu0
        %v601 = vlaneseq
        %v602 = vshrl.u32 %v601, 7
        %v603 = vadd.s32 %v602, 8
        %v604 = vadd.s32 %v602, 16
        %v605 = vadd.s32 %v602, 24
        %v606 = vadd.s32 %v602, 32
        %v607 = vadd.s32 %v602, 40
        %v608 = vadd.s32 %v602, 48
        %v609 = vadd.s32 %v602, 56
        %vm610 = vcmp.lt.s32.totalorder %v602, 0
        %v611 = vsub.s32 0, %v602
        %v612 = vsel %vm610, %v611, %v602
        %v613 = vshrl.u32 %v612, 1
        %v614 = vand.u32 %v612, 1
        %v615 = vsub.s32 0, %v614
        %v616 = vsel %vm610, %v615, %v614
        %vm617 = vcmp.lt.s32.totalorder %v603, 0
        %v618 = vsub.s32 0, %v603
        %v619 = vsel %vm617, %v618, %v603
        %v620 = vshrl.u32 %v619, 1
        %v621 = vand.u32 %v619, 1
        %v622 = vsub.s32 0, %v621
        %v623 = vsel %vm617, %v622, %v621
        %vm624 = vcmp.lt.s32.totalorder %v604, 0
        %v625 = vsub.s32 0, %v604
        %v626 = vsel %vm624, %v625, %v604
        %v627 = vshrl.u32 %v626, 1
        %v628 = vand.u32 %v626, 1
        %v629 = vsub.s32 0, %v628
        %v630 = vsel %vm624, %v629, %v628
        %vm631 = vcmp.lt.s32.totalorder %v605, 0
        %v632 = vsub.s32 0, %v605
        %v633 = vsel %vm631, %v632, %v605
        %v634 = vshrl.u32 %v633, 1
        %v635 = vand.u32 %v633, 1
        %v636 = vsub.s32 0, %v635
        %v637 = vsel %vm631, %v636, %v635
        %vm638 = vcmp.lt.s32.totalorder %v606, 0
        %v639 = vsub.s32 0, %v606
        %v640 = vsel %vm638, %v639, %v606
        %v641 = vshrl.u32 %v640, 1
        %v642 = vand.u32 %v640, 1
        %v643 = vsub.s32 0, %v642
        %v644 = vsel %vm638, %v643, %v642
        %vm645 = vcmp.lt.s32.totalorder %v607, 0
        %v646 = vsub.s32 0, %v607
        %v647 = vsel %vm645, %v646, %v607
        %v648 = vshrl.u32 %v647, 1
        %v649 = vand.u32 %v647, 1
        %v650 = vsub.s32 0, %v649
        %v651 = vsel %vm645, %v650, %v649
        %vm652 = vcmp.lt.s32.totalorder %v608, 0
        %v653 = vsub.s32 0, %v608
        %v654 = vsel %vm652, %v653, %v608
        %v655 = vshrl.u32 %v654, 1
        %v656 = vand.u32 %v654, 1
        %v657 = vsub.s32 0, %v656
        %v658 = vsel %vm652, %v657, %v656
        %vm659 = vcmp.lt.s32.totalorder %v609, 0
        %v660 = vsub.s32 0, %v609
        %v661 = vsel %vm659, %v660, %v609
        %v662 = vshrl.u32 %v661, 1
        %v663 = vand.u32 %v661, 1
        %v664 = vsub.s32 0, %v663
        %v665 = vsel %vm659, %v664, %v663
        %vm666 = vcmp.ne.s32.totalorder %v616, 0
        %vm667 = vcmp.ne.s32.totalorder %v623, 0
        %vm668 = vcmp.ne.s32.totalorder %v630, 0
        %vm669 = vcmp.ne.s32.totalorder %v637, 0
        %vm670 = vcmp.ne.s32.totalorder %v644, 0
        %vm671 = vcmp.ne.s32.totalorder %v651, 0
        %vm672 = vcmp.ne.s32.totalorder %v658, 0
        %vm673 = vcmp.ne.s32.totalorder %v665, 0
        %vm674 = vcmp.lt.s32.totalorder %v616, 0
        %vm675 = vcmp.lt.s32.totalorder %v623, 0
        %vm676 = vcmp.lt.s32.totalorder %v630, 0
        %vm677 = vcmp.lt.s32.totalorder %v637, 0
        %vm678 = vcmp.lt.s32.totalorder %v644, 0
        %vm679 = vcmp.lt.s32.totalorder %v651, 0
        %vm680 = vcmp.lt.s32.totalorder %v658, 0
        %vm681 = vcmp.lt.s32.totalorder %v665, 0
        %vm682 = vmand %vm674, %vm666
        %vm683 = vmand %vm675, %vm667
        %vm684 = vmand %vm676, %vm668
        %vm685 = vmand %vm677, %vm669
        %vm686 = vmand %vm678, %vm670
        %vm687 = vmand %vm679, %vm671
        %vm688 = vmand %vm680, %vm672
        %vm689 = vmand %vm681, %vm673
        %v690 = vadd.s32 %v616, 2
        %v691 = vadd.s32 %v623, 2
        %v692 = vadd.s32 %v630, 2
        %v693 = vadd.s32 %v637, 2
        %v694 = vadd.s32 %v644, 2
        %v695 = vadd.s32 %v651, 2
        %v696 = vadd.s32 %v658, 2
        %v697 = vadd.s32 %v665, 2
        %v698 = vsel %vm682, %v690, %v616
        %v699 = vsel %vm683, %v691, %v623
        %v700 = vsel %vm684, %v692, %v630
        %v701 = vsel %vm685, %v693, %v637
        %v702 = vsel %vm686, %v694, %v644
        %v703 = vsel %vm687, %v695, %v651
        %v704 = vsel %vm688, %v696, %v658
        %v705 = vsel %vm689, %v697, %v665
        %vm706 = vcmp.eq.s32.totalorder %v698, 0
        %vm707 = vcmp.eq.s32.totalorder %v699, 0
        %vm708 = vcmp.eq.s32.totalorder %v700, 0
        %vm709 = vcmp.eq.s32.totalorder %v701, 0
        %vm710 = vcmp.eq.s32.totalorder %v702, 0
        %vm711 = vcmp.eq.s32.totalorder %v703, 0
        %vm712 = vcmp.eq.s32.totalorder %v704, 0
        %vm713 = vcmp.eq.s32.totalorder %v705, 0
        %v714 = vadd.f32 %v524, %v582
        %715 = vadd.xlane.f32.xlu0 %v714
        %v716 = vpop.xlane.xlu0 %715
        %v717 = vadd.f32 %v526, %v584
        %718 = vadd.xlane.f32.xlu0 %v717
        %v719 = vpop.xlane.xlu0 %718
        %v720 = vadd.f32 %v529, %v587
        %721 = vadd.xlane.f32.xlu0 %v720
        %v722 = vpop.xlane.xlu0 %721
        %v723 = vadd.f32 %v531, %v589
        %724 = vadd.xlane.f32.xlu0 %v723
        %v725 = vpop.xlane.xlu0 %724
        %v726 = vadd.f32 %v534, %v592
        %727 = vadd.xlane.f32.xlu0 %v726
        %v728 = vpop.xlane.xlu0 %727
        %v729 = vadd.f32 %v536, %v594
        %730 = vadd.xlane.f32.xlu0 %v729
        %v731 = vpop.xlane.xlu0 %730
        %v732 = vadd.f32 %v539, %v597
        %733 = vadd.xlane.f32.xlu0 %v732
        %v734 = vpop.xlane.xlu0 %733
        %v735 = vadd.f32 %v541, %v599
        %736 = vadd.xlane.f32.xlu0 %v735
        %v737 = vpop.xlane.xlu0 %736
        %v738 = vmul.f32 %v524, %v524
        %v739 = vmul.f32 %v582, %v582
        %v740 = vmul.f32 %v526, %v526
        %v741 = vmul.f32 %v584, %v584
        %v742 = vmul.f32 %v529, %v529
        %v743 = vmul.f32 %v587, %v587
        %v744 = vmul.f32 %v531, %v531
        %v745 = vmul.f32 %v589, %v589
        %v746 = vmul.f32 %v534, %v534
        %v747 = vmul.f32 %v592, %v592
        %v748 = vmul.f32 %v536, %v536
        %v749 = vmul.f32 %v594, %v594
        %v750 = vmul.f32 %v539, %v539
        %v751 = vmul.f32 %v597, %v597
        %v752 = vmul.f32 %v541, %v541
        %v753 = vmul.f32 %v599, %v599
        %v754 = vadd.f32 %v738, %v739
        %755 = vadd.xlane.f32.xlu0 %v754
        %v756 = vpop.xlane.xlu0 %755
        %v757 = vadd.f32 %v740, %v741
        %758 = vadd.xlane.f32.xlu0 %v757
        %v759 = vpop.xlane.xlu0 %758
        %v760 = vadd.f32 %v742, %v743
        %761 = vadd.xlane.f32.xlu0 %v760
        %v762 = vpop.xlane.xlu0 %761
        %v763 = vadd.f32 %v744, %v745
        %764 = vadd.xlane.f32.xlu0 %v763
        %v765 = vpop.xlane.xlu0 %764
        %v766 = vadd.f32 %v746, %v747
        %767 = vadd.xlane.f32.xlu0 %v766
        %v768 = vpop.xlane.xlu0 %767
        %v769 = vadd.f32 %v748, %v749
        %770 = vadd.xlane.f32.xlu0 %v769
        %v771 = vpop.xlane.xlu0 %770
        %v772 = vadd.f32 %v750, %v751
        %773 = vadd.xlane.f32.xlu0 %v772
        %v774 = vpop.xlane.xlu0 %773
        %v775 = vadd.f32 %v752, %v753
        %776 = vadd.xlane.f32.xlu0 %v775
        %v777 = vpop.xlane.xlu0 %776
        %vm778 = vcmask 7168
        %v779 = vsel %vm778, %v716, %v756
        %v780 = vsel %vm778, %v719, %v759
        %v781 = vsel %vm778, %v722, %v762
        %v782 = vsel %vm778, %v725, %v765
        %v783 = vsel %vm778, %v728, %v768
        %v784 = vsel %vm778, %v731, %v771
        %v785 = vsel %vm778, %v734, %v774
        %v786 = vsel %vm778, %v737, %v777
        %v787 = vrot.slane %v779, 1
        %v788 = vrot.slane %v780, 1
        %v789 = vrot.slane %v781, 1
        %v790 = vrot.slane %v782, 1
        %v791 = vrot.slane %v783, 1
        %v792 = vrot.slane %v784, 1
        %v793 = vrot.slane %v785, 1
        %v794 = vrot.slane %v786, 1
        %vm795 = vcmp.lt.s32.totalorder %v602, 7
        %v796 = vsel %vm795, %v793, %v794
        %v797 = vsel %vm795, %v792, %v793
        %v798 = vsel %vm795, %v791, %v792
        %v799 = vsel %vm795, %v790, %v791
        %v800 = vsel %vm795, %v789, %v790
        %v801 = vsel %vm795, %v788, %v789
        %v802 = vsel %vm795, %v787, %v788
        %v803 = vsel %vm795, %v794, %v787
        %v804 = vrot.slane %v779, 7
        %v805 = vrot.slane %v780, 7
        %v806 = vrot.slane %v781, 7
        %v807 = vrot.slane %v782, 7
        %v808 = vrot.slane %v783, 7
        %v809 = vrot.slane %v784, 7
        %v810 = vrot.slane %v785, 7
        %v811 = vrot.slane %v786, 7
        %vm812 = vcmp.lt.s32.totalorder %v602, 1
        %v813 = vsel %vm812, %v810, %v811
        %v814 = vsel %vm812, %v809, %v810
        %v815 = vsel %vm812, %v808, %v809
        %v816 = vsel %vm812, %v807, %v808
        %v817 = vsel %vm812, %v806, %v807
        %v818 = vsel %vm812, %v805, %v806
        %v819 = vsel %vm812, %v804, %v805
        %v820 = vsel %vm812, %v811, %v804
        %v821 = vsel %vm706, %v802, %v820
        %v822 = vsel %vm707, %v801, %v819
        %v823 = vsel %vm708, %v800, %v818
        %v824 = vsel %vm709, %v799, %v817
        %v825 = vsel %vm710, %v798, %v816
        %v826 = vsel %vm711, %v797, %v815
        %v827 = vsel %vm712, %v796, %v814
        %v828 = vsel %vm713, %v803, %v813
        %v829 = vadd.f32 %v779, %v821
        %v830 = vadd.f32 %v780, %v822
        %v831 = vadd.f32 %v781, %v823
        %v832 = vadd.f32 %v782, %v824
        %v833 = vadd.f32 %v783, %v825
        %v834 = vadd.f32 %v784, %v826
        %v835 = vadd.f32 %v785, %v827
        %v836 = vadd.f32 %v786, %v828
        %v837 = vmul.f32 %v829, 0.001953125
        %v838 = vmul.f32 %v830, 0.001953125
        %v839 = vmul.f32 %v831, 0.001953125
        %v840 = vmul.f32 %v832, 0.001953125
        %v841 = vmul.f32 %v833, 0.001953125
        %v842 = vmul.f32 %v834, 0.001953125
        %v843 = vmul.f32 %v835, 0.001953125
        %v844 = vmul.f32 %v836, 0.001953125
        %v845 = vmul.f32 %v837, %v837
        %v846 = vmul.f32 %v838, %v838
        %v847 = vmul.f32 %v839, %v839
        %v848 = vmul.f32 %v840, %v840
        %v849 = vmul.f32 %v841, %v841
        %v850 = vmul.f32 %v842, %v842
        %v851 = vmul.f32 %v843, %v843
        %v852 = vmul.f32 %v844, %v844
        %861 = vrot.lane.b32.xlu0 %v845, 1
        %v862 = vpop.permute.xlu0 %861
        %863 = vrot.lane.b32.xlu0 %v846, 1
        %v864 = vpop.permute.xlu0 %863
        %865 = vrot.lane.b32.xlu0 %v847, 1
        %v866 = vpop.permute.xlu0 %865
        %867 = vrot.lane.b32.xlu0 %v848, 1
        %v868 = vpop.permute.xlu0 %867
        %869 = vrot.lane.b32.xlu0 %v849, 1
        %v870 = vpop.permute.xlu0 %869
        %871 = vrot.lane.b32.xlu0 %v850, 1
        %v872 = vpop.permute.xlu0 %871
        %873 = vrot.lane.b32.xlu0 %v851, 1
        %v874 = vpop.permute.xlu0 %873
        %875 = vrot.lane.b32.xlu0 %v852, 1
        %v876 = vpop.permute.xlu0 %875
        %v885 = vsub.f32 %v837, %v862
        %v886 = vsub.f32 %v838, %v864
        %v887 = vsub.f32 %v839, %v866
        %v888 = vsub.f32 %v840, %v868
        %v889 = vsub.f32 %v841, %v870
        %v890 = vsub.f32 %v842, %v872
        %v891 = vsub.f32 %v843, %v874
        %v892 = vsub.f32 %v844, %v876
        %v893 = vadd.f32 %v885, 1e-05
        %v894 = vadd.f32 %v886, 1e-05
        %v895 = vadd.f32 %v887, 1e-05
        %v896 = vadd.f32 %v888, 1e-05
        %v897 = vadd.f32 %v889, 1e-05
        %v898 = vadd.f32 %v890, 1e-05
        %v899 = vadd.f32 %v891, 1e-05
        %v900 = vadd.f32 %v892, 1e-05
        %v901 = vrsqrt.pop %v893
        %v902 = vmul.f32 %v901, %v893
        %v903 = vmul.f32 %v902, %v901
        %v904 = vmul.f32 0.5, %v903
        %v905 = vsub.f32 1.5, %v904
        %v906 = vmul.f32 %v901, %v905
        %vm907 = vweird.f32 %v893
        %vm908 = vweird.f32 %v901
        %vm909 = vmor %vm907, %vm908
        %v910 = vsel %vm909, %v901, %v906
        %v911 = vrsqrt.pop %v894
        %v912 = vmul.f32 %v911, %v894
        %v913 = vmul.f32 %v912, %v911
        %v914 = vmul.f32 0.5, %v913
        %v915 = vsub.f32 1.5, %v914
        %v916 = vmul.f32 %v911, %v915
        %vm917 = vweird.f32 %v894
        %vm918 = vweird.f32 %v911
        %vm919 = vmor %vm917, %vm918
        %v920 = vsel %vm919, %v911, %v916
        %v921 = vrsqrt.pop %v895
        %v922 = vmul.f32 %v921, %v895
        %v923 = vmul.f32 %v922, %v921
        %v924 = vmul.f32 0.5, %v923
        %v925 = vsub.f32 1.5, %v924
        %v926 = vmul.f32 %v921, %v925
        %vm927 = vweird.f32 %v895
        %vm928 = vweird.f32 %v921
        %vm929 = vmor %vm927, %vm928
        %v930 = vsel %vm929, %v921, %v926
        %v931 = vrsqrt.pop %v896
        %v932 = vmul.f32 %v931, %v896
        %v933 = vmul.f32 %v932, %v931
        %v934 = vmul.f32 0.5, %v933
        %v935 = vsub.f32 1.5, %v934
        %v936 = vmul.f32 %v931, %v935
        %vm937 = vweird.f32 %v896
        %vm938 = vweird.f32 %v931
        %vm939 = vmor %vm937, %vm938
        %v940 = vsel %vm939, %v931, %v936
        %v941 = vrsqrt.pop %v897
        %v942 = vmul.f32 %v941, %v897
        %v943 = vmul.f32 %v942, %v941
        %v944 = vmul.f32 0.5, %v943
        %v945 = vsub.f32 1.5, %v944
        %v946 = vmul.f32 %v941, %v945
        %vm947 = vweird.f32 %v897
        %vm948 = vweird.f32 %v941
        %vm949 = vmor %vm947, %vm948
        %v950 = vsel %vm949, %v941, %v946
        %v951 = vrsqrt.pop %v898
        %v952 = vmul.f32 %v951, %v898
        %v953 = vmul.f32 %v952, %v951
        %v954 = vmul.f32 0.5, %v953
        %v955 = vsub.f32 1.5, %v954
        %v956 = vmul.f32 %v951, %v955
        %vm957 = vweird.f32 %v898
        %vm958 = vweird.f32 %v951
        %vm959 = vmor %vm957, %vm958
        %v960 = vsel %vm959, %v951, %v956
        %v961 = vrsqrt.pop %v899
        %v962 = vmul.f32 %v961, %v899
        %v963 = vmul.f32 %v962, %v961
        %v964 = vmul.f32 0.5, %v963
        %v965 = vsub.f32 1.5, %v964
        %v966 = vmul.f32 %v961, %v965
        %vm967 = vweird.f32 %v899
        %vm968 = vweird.f32 %v961
        %vm969 = vmor %vm967, %vm968
        %v970 = vsel %vm969, %v961, %v966
        %v971 = vrsqrt.pop %v900
        %v972 = vmul.f32 %v971, %v900
        %v973 = vmul.f32 %v972, %v971
        %v974 = vmul.f32 0.5, %v973
        %v975 = vsub.f32 1.5, %v974
        %v976 = vmul.f32 %v971, %v975
        %vm977 = vweird.f32 %v900
        %vm978 = vweird.f32 %v971
        %vm979 = vmor %vm977, %vm978
        %v980 = vsel %vm979, %v971, %v976
        %982 = vset.pattern.permute.xlu0 0
        %983 = vperm.xlu0 %982, %v837
        %v984 = vpop.permute.xlu0 %983
        %987 = vset.pattern.permute.xlu0 0
        %988 = vperm.xlu0 %987, %v838
        %v989 = vpop.permute.xlu0 %988
        %992 = vset.pattern.permute.xlu0 0
        %993 = vperm.xlu0 %992, %v839
        %v994 = vpop.permute.xlu0 %993
        %997 = vset.pattern.permute.xlu0 0
        %998 = vperm.xlu0 %997, %v840
        %v999 = vpop.permute.xlu0 %998
        %1002 = vset.pattern.permute.xlu0 0
        %1003 = vperm.xlu0 %1002, %v841
        %v1004 = vpop.permute.xlu0 %1003
        %1007 = vset.pattern.permute.xlu0 0
        %1008 = vperm.xlu0 %1007, %v842
        %v1009 = vpop.permute.xlu0 %1008
        %1012 = vset.pattern.permute.xlu0 0
        %1013 = vperm.xlu0 %1012, %v843
        %v1014 = vpop.permute.xlu0 %1013
        %1017 = vset.pattern.permute.xlu0 0
        %1018 = vperm.xlu0 %1017, %v844
        %v1019 = vpop.permute.xlu0 %1018
        %v1021 = vsub.f32 %v524, %v984
        %v1022 = vsub.f32 %v582, %v984
        %v1023 = vsub.f32 %v526, %v989
        %v1024 = vsub.f32 %v584, %v989
        %v1025 = vsub.f32 %v529, %v994
        %v1026 = vsub.f32 %v587, %v994
        %v1027 = vsub.f32 %v531, %v999
        %v1028 = vsub.f32 %v589, %v999
        %v1029 = vsub.f32 %v534, %v1004
        %v1030 = vsub.f32 %v592, %v1004
        %v1031 = vsub.f32 %v536, %v1009
        %v1032 = vsub.f32 %v594, %v1009
        %v1033 = vsub.f32 %v539, %v1014
        %v1034 = vsub.f32 %v597, %v1014
        %v1035 = vsub.f32 %v541, %v1019
        %v1036 = vsub.f32 %v599, %v1019
        %v1037 = vmul.f32 %v910, %v298
        %v1038 = vmul.f32 %v920, %v299
        %v1039 = vmul.f32 %v930, %v300
        %v1040 = vmul.f32 %v940, %v301
        %v1041 = vmul.f32 %v950, %v302
        %v1042 = vmul.f32 %v960, %v303
        %v1043 = vmul.f32 %v970, %v304
        %v1044 = vmul.f32 %v980, %v305
        %1046 = vset.pattern.permute.xlu0 1
        %1047 = vperm.xlu0 %1046, %v1037
        %v1048 = vpop.permute.xlu0 %1047
        %1051 = vset.pattern.permute.xlu0 1
        %1052 = vperm.xlu0 %1051, %v1038
        %v1053 = vpop.permute.xlu0 %1052
        %1056 = vset.pattern.permute.xlu0 1
        %1057 = vperm.xlu0 %1056, %v1039
        %v1058 = vpop.permute.xlu0 %1057
        %1061 = vset.pattern.permute.xlu0 1
        %1062 = vperm.xlu0 %1061, %v1040
        %v1063 = vpop.permute.xlu0 %1062
        %1066 = vset.pattern.permute.xlu0 1
        %1067 = vperm.xlu0 %1066, %v1041
        %v1068 = vpop.permute.xlu0 %1067
        %1071 = vset.pattern.permute.xlu0 1
        %1072 = vperm.xlu0 %1071, %v1042
        %v1073 = vpop.permute.xlu0 %1072
        %1076 = vset.pattern.permute.xlu0 1
        %1077 = vperm.xlu0 %1076, %v1043
        %v1078 = vpop.permute.xlu0 %1077
        %1081 = vset.pattern.permute.xlu0 1
        %1082 = vperm.xlu0 %1081, %v1044
        %v1083 = vpop.permute.xlu0 %1082
        %v1085 = vmul.f32 %v1021, %v1048
        %v1086 = vmul.f32 %v1022, %v1048
        %v1087 = vmul.f32 %v1023, %v1053
        %v1088 = vmul.f32 %v1024, %v1053
        %v1089 = vmul.f32 %v1025, %v1058
        %v1090 = vmul.f32 %v1026, %v1058
        %v1091 = vmul.f32 %v1027, %v1063
        %v1092 = vmul.f32 %v1028, %v1063
        %v1093 = vmul.f32 %v1029, %v1068
        %v1094 = vmul.f32 %v1030, %v1068
        %v1095 = vmul.f32 %v1031, %v1073
        %v1096 = vmul.f32 %v1032, %v1073
        %v1097 = vmul.f32 %v1033, %v1078
        %v1098 = vmul.f32 %v1034, %v1078
        %v1099 = vmul.f32 %v1035, %v1083
        %v1100 = vmul.f32 %v1036, %v1083
        %1101 = vset.pattern.permute.xlu0 2
        %1102 = vperm.xlu0 %1101, %v298
        %v1103 = vpop.permute.xlu0 %1102
        %1105 = vset.pattern.permute.xlu0 2
        %1106 = vperm.xlu0 %1105, %v299
        %v1107 = vpop.permute.xlu0 %1106
        %1109 = vset.pattern.permute.xlu0 2
        %1110 = vperm.xlu0 %1109, %v300
        %v1111 = vpop.permute.xlu0 %1110
        %1113 = vset.pattern.permute.xlu0 2
        %1114 = vperm.xlu0 %1113, %v301
        %v1115 = vpop.permute.xlu0 %1114
        %1117 = vset.pattern.permute.xlu0 2
        %1118 = vperm.xlu0 %1117, %v302
        %v1119 = vpop.permute.xlu0 %1118
        %1121 = vset.pattern.permute.xlu0 2
        %1122 = vperm.xlu0 %1121, %v303
        %v1123 = vpop.permute.xlu0 %1122
        %1125 = vset.pattern.permute.xlu0 2
        %1126 = vperm.xlu0 %1125, %v304
        %v1127 = vpop.permute.xlu0 %1126
        %1129 = vset.pattern.permute.xlu0 2
        %1130 = vperm.xlu0 %1129, %v305
        %v1131 = vpop.permute.xlu0 %1130
        %v1133 = vadd.f32 %v1085, %v1103
        %v1134 = vadd.f32 %v1086, %v1103
        %v1135 = vadd.f32 %v1087, %v1107
        %v1136 = vadd.f32 %v1088, %v1107
        %v1137 = vadd.f32 %v1089, %v1111
        %v1138 = vadd.f32 %v1090, %v1111
        %v1139 = vadd.f32 %v1091, %v1115
        %v1140 = vadd.f32 %v1092, %v1115
        %v1141 = vadd.f32 %v1093, %v1119
        %v1142 = vadd.f32 %v1094, %v1119
        %v1143 = vadd.f32 %v1095, %v1123
        %v1144 = vadd.f32 %v1096, %v1123
        %v1145 = vadd.f32 %v1097, %v1127
        %v1146 = vadd.f32 %v1098, %v1127
        %v1147 = vadd.f32 %v1099, %v1131
        %v1148 = vadd.f32 %v1100, %v1131
        %v1149 = vmax.f32 %v1133, 0.0
        %v1150 = vmax.f32 %v1134, 0.0
        %v1151 = vmax.f32 %v1135, 0.0
        %v1152 = vmax.f32 %v1136, 0.0
        %v1153 = vmax.f32 %v1137, 0.0
        %v1154 = vmax.f32 %v1138, 0.0
        %v1155 = vmax.f32 %v1139, 0.0
        %v1156 = vmax.f32 %v1140, 0.0
        %v1157 = vmax.f32 %v1141, 0.0
        %v1158 = vmax.f32 %v1142, 0.0
        %v1159 = vmax.f32 %v1143, 0.0
        %v1160 = vmax.f32 %v1144, 0.0
        %v1161 = vmax.f32 %v1145, 0.0
        %v1162 = vmax.f32 %v1146, 0.0
        %v1163 = vmax.f32 %v1147, 0.0
        %v1164 = vmax.f32 %v1148, 0.0
        %v1165 = vlaneseq
        %v1166 = vand.u32 %v1165, 127
        %v1167 = vadd.s32 %v1166, 128
        %vm1168 = vcmp.lt.s32.totalorder %v1166, 0
        %v1169 = vsub.s32 0, %v1166
        %v1170 = vsel %vm1168, %v1169, %v1166
        %v1171 = vshrl.u32 %v1170, 8
        %v1172 = vand.u32 %v1170, 255
        %v1173 = vsub.s32 0, %v1172
        %v1174 = vsel %vm1168, %v1173, %v1172
        %vm1175 = vcmp.lt.s32.totalorder %v1167, 0
        %v1176 = vsub.s32 0, %v1167
        %v1177 = vsel %vm1175, %v1176, %v1167
        %v1178 = vshrl.u32 %v1177, 8
        %v1179 = vand.u32 %v1177, 255
        %v1180 = vsub.s32 0, %v1179
        %v1181 = vsel %vm1175, %v1180, %v1179
        %vm1182 = vcmp.ne.s32.totalorder %v1174, 0
        %vm1183 = vcmp.ne.s32.totalorder %v1181, 0
        %vm1184 = vcmp.lt.s32.totalorder %v1174, 0
        %vm1185 = vcmp.lt.s32.totalorder %v1181, 0
        %vm1186 = vmand %vm1184, %vm1182
        %vm1187 = vmand %vm1185, %vm1183
        %v1188 = vadd.s32 %v1174, 256
        %v1189 = vadd.s32 %v1181, 256
        %v1190 = vsel %vm1186, %v1188, %v1174
        %v1191 = vsel %vm1187, %v1189, %v1181
        %vm1192 = vcmp.lt.s32.totalorder %v1190, 16
        %vm1193 = vcmp.lt.s32.totalorder %v1191, 16
        %vm1194 = vcmp.ge.s32.totalorder %v1190, 240
        %vm1195 = vcmp.ge.s32.totalorder %v1191, 240
        %vm1196 = vcmp.lt.s32.totalorder %v1166, 0
        %v1197 = vsub.s32 0, %v1166
        %v1198 = vsel %vm1196, %v1197, %v1166
        %v1199 = vshrl.u32 %v1198, 4
        %v1200 = vand.u32 %v1198, 15
        %v1201 = vsub.s32 0, %v1200
        %v1202 = vsel %vm1196, %v1201, %v1200
        %vm1203 = vcmp.lt.s32.totalorder %v1167, 0
        %v1204 = vsub.s32 0, %v1167
        %v1205 = vsel %vm1203, %v1204, %v1167
        %v1206 = vshrl.u32 %v1205, 4
        %v1207 = vand.u32 %v1205, 15
        %v1208 = vsub.s32 0, %v1207
        %v1209 = vsel %vm1203, %v1208, %v1207
        %vm1210 = vcmp.ne.s32.totalorder %v1202, 0
        %vm1211 = vcmp.ne.s32.totalorder %v1209, 0
        %vm1212 = vcmp.lt.s32.totalorder %v1202, 0
        %vm1213 = vcmp.lt.s32.totalorder %v1209, 0
        %vm1214 = vmand %vm1212, %vm1210
        %vm1215 = vmand %vm1213, %vm1211
        %v1216 = vadd.s32 %v1202, 16
        %v1217 = vadd.s32 %v1209, 16
        %v1218 = vsel %vm1214, %v1216, %v1202
        %v1219 = vsel %vm1215, %v1217, %v1209
        %vm1220 = vcmp.eq.s32.totalorder %v1218, 0
        %vm1221 = vcmp.eq.s32.totalorder %v1219, 0
        %vm1222 = vcmp.eq.s32.totalorder %v1218, 15
        %vm1223 = vcmp.eq.s32.totalorder %v1219, 15
        %1224 = vrot.lane.b32.xlu0 %v1149, 16
        %v1225 = vpop.permute.xlu0 %1224
        %1226 = vrot.lane.b32.xlu0 %v1151, 16
        %v1227 = vpop.permute.xlu0 %1226
        %1228 = vrot.lane.b32.xlu0 %v1153, 16
        %v1229 = vpop.permute.xlu0 %1228
        %1230 = vrot.lane.b32.xlu0 %v1155, 16
        %v1231 = vpop.permute.xlu0 %1230
        %1232 = vrot.lane.b32.xlu0 %v1157, 16
        %v1233 = vpop.permute.xlu0 %1232
        %1234 = vrot.lane.b32.xlu0 %v1159, 16
        %v1235 = vpop.permute.xlu0 %1234
        %1236 = vrot.lane.b32.xlu0 %v1161, 16
        %v1237 = vpop.permute.xlu0 %1236
        %1238 = vrot.lane.b32.xlu0 %v1163, 16
        %v1239 = vpop.permute.xlu0 %1238
        %1240 = vrot.lane.b32.xlu0 %v1150, 16
        %v1241 = vpop.permute.xlu0 %1240
        %1242 = vrot.lane.b32.xlu0 %v1152, 16
        %v1243 = vpop.permute.xlu0 %1242
        %1244 = vrot.lane.b32.xlu0 %v1154, 16
        %v1245 = vpop.permute.xlu0 %1244
        %1246 = vrot.lane.b32.xlu0 %v1156, 16
        %v1247 = vpop.permute.xlu0 %1246
        %1248 = vrot.lane.b32.xlu0 %v1158, 16
        %v1249 = vpop.permute.xlu0 %1248
        %1250 = vrot.lane.b32.xlu0 %v1160, 16
        %v1251 = vpop.permute.xlu0 %1250
        %1252 = vrot.lane.b32.xlu0 %v1162, 16
        %v1253 = vpop.permute.xlu0 %1252
        %1254 = vrot.lane.b32.xlu0 %v1164, 16
        %v1255 = vpop.permute.xlu0 %1254
        %vm1256 = vcmp.lt.s32.totalorder %v1166, 16
        %v1257 = vsel %vm1256, %v1225, %v1241
        %v1258 = vsel %vm1256, %v1227, %v1243
        %v1259 = vsel %vm1256, %v1229, %v1245
        %v1260 = vsel %vm1256, %v1231, %v1247
        %v1261 = vsel %vm1256, %v1233, %v1249
        %v1262 = vsel %vm1256, %v1235, %v1251
        %v1263 = vsel %vm1256, %v1237, %v1253
        %v1264 = vsel %vm1256, %v1239, %v1255
        %v1265 = vsel %vm1256, %v1241, %v1225
        %v1266 = vsel %vm1256, %v1243, %v1227
        %v1267 = vsel %vm1256, %v1245, %v1229
        %v1268 = vsel %vm1256, %v1247, %v1231
        %v1269 = vsel %vm1256, %v1249, %v1233
        %v1270 = vsel %vm1256, %v1251, %v1235
        %v1271 = vsel %vm1256, %v1253, %v1237
        %v1272 = vsel %vm1256, %v1255, %v1239
        %v1273 = vsel %vm1192, %v1149, %v1265
        %v1274 = vsel %vm1193, %v1150, %v1257
        %v1275 = vsel %vm1192, %v1151, %v1266
        %v1276 = vsel %vm1193, %v1152, %v1258
        %v1277 = vsel %vm1192, %v1153, %v1267
        %v1278 = vsel %vm1193, %v1154, %v1259
        %v1279 = vsel %vm1192, %v1155, %v1268
        %v1280 = vsel %vm1193, %v1156, %v1260
        %v1281 = vsel %vm1192, %v1157, %v1269
        %v1282 = vsel %vm1193, %v1158, %v1261
        %v1283 = vsel %vm1192, %v1159, %v1270
        %v1284 = vsel %vm1193, %v1160, %v1262
        %v1285 = vsel %vm1192, %v1161, %v1271
        %v1286 = vsel %vm1193, %v1162, %v1263
        %v1287 = vsel %vm1192, %v1163, %v1272
        %v1288 = vsel %vm1193, %v1164, %v1264
        %1289 = vrot.lane.b32.xlu0 %v1149, 112
        %v1290 = vpop.permute.xlu0 %1289
        %1291 = vrot.lane.b32.xlu0 %v1151, 112
        %v1292 = vpop.permute.xlu0 %1291
        %1293 = vrot.lane.b32.xlu0 %v1153, 112
        %v1294 = vpop.permute.xlu0 %1293
        %1295 = vrot.lane.b32.xlu0 %v1155, 112
        %v1296 = vpop.permute.xlu0 %1295
        %1297 = vrot.lane.b32.xlu0 %v1157, 112
        %v1298 = vpop.permute.xlu0 %1297
        %1299 = vrot.lane.b32.xlu0 %v1159, 112
        %v1300 = vpop.permute.xlu0 %1299
        %1301 = vrot.lane.b32.xlu0 %v1161, 112
        %v1302 = vpop.permute.xlu0 %1301
        %1303 = vrot.lane.b32.xlu0 %v1163, 112
        %v1304 = vpop.permute.xlu0 %1303
        %1305 = vrot.lane.b32.xlu0 %v1150, 112
        %v1306 = vpop.permute.xlu0 %1305
        %1307 = vrot.lane.b32.xlu0 %v1152, 112
        %v1308 = vpop.permute.xlu0 %1307
        %1309 = vrot.lane.b32.xlu0 %v1154, 112
        %v1310 = vpop.permute.xlu0 %1309
        %1311 = vrot.lane.b32.xlu0 %v1156, 112
        %v1312 = vpop.permute.xlu0 %1311
        %1313 = vrot.lane.b32.xlu0 %v1158, 112
        %v1314 = vpop.permute.xlu0 %1313
        %1315 = vrot.lane.b32.xlu0 %v1160, 112
        %v1316 = vpop.permute.xlu0 %1315
        %1317 = vrot.lane.b32.xlu0 %v1162, 112
        %v1318 = vpop.permute.xlu0 %1317
        %1319 = vrot.lane.b32.xlu0 %v1164, 112
        %v1320 = vpop.permute.xlu0 %1319
        %vm1321 = vcmp.lt.s32.totalorder %v1166, 112
        %v1322 = vsel %vm1321, %v1290, %v1306
        %v1323 = vsel %vm1321, %v1292, %v1308
        %v1324 = vsel %vm1321, %v1294, %v1310
        %v1325 = vsel %vm1321, %v1296, %v1312
        %v1326 = vsel %vm1321, %v1298, %v1314
        %v1327 = vsel %vm1321, %v1300, %v1316
        %v1328 = vsel %vm1321, %v1302, %v1318
        %v1329 = vsel %vm1321, %v1304, %v1320
        %v1330 = vsel %vm1321, %v1306, %v1290
        %v1331 = vsel %vm1321, %v1308, %v1292
        %v1332 = vsel %vm1321, %v1310, %v1294
        %v1333 = vsel %vm1321, %v1312, %v1296
        %v1334 = vsel %vm1321, %v1314, %v1298
        %v1335 = vsel %vm1321, %v1316, %v1300
        %v1336 = vsel %vm1321, %v1318, %v1302
        %v1337 = vsel %vm1321, %v1320, %v1304
        %v1338 = vsel %vm1194, %v1149, %v1322
        %v1339 = vsel %vm1195, %v1150, %v1330
        %v1340 = vsel %vm1194, %v1151, %v1323
        %v1341 = vsel %vm1195, %v1152, %v1331
        %v1342 = vsel %vm1194, %v1153, %v1324
        %v1343 = vsel %vm1195, %v1154, %v1332
        %v1344 = vsel %vm1194, %v1155, %v1325
        %v1345 = vsel %vm1195, %v1156, %v1333
        %v1346 = vsel %vm1194, %v1157, %v1326
        %v1347 = vsel %vm1195, %v1158, %v1334
        %v1348 = vsel %vm1194, %v1159, %v1327
        %v1349 = vsel %vm1195, %v1160, %v1335
        %v1350 = vsel %vm1194, %v1161, %v1328
        %v1351 = vsel %vm1195, %v1162, %v1336
        %v1352 = vsel %vm1194, %v1163, %v1329
        %v1353 = vsel %vm1195, %v1164, %v1337
        %v1354 = vmul.f32 %v1149, 0.75
        %v1355 = vmul.f32 %v1150, 0.75
        %v1356 = vmul.f32 %v1151, 0.75
        %v1357 = vmul.f32 %v1152, 0.75
        %v1358 = vmul.f32 %v1153, 0.75
        %v1359 = vmul.f32 %v1154, 0.75
        %v1360 = vmul.f32 %v1155, 0.75
        %v1361 = vmul.f32 %v1156, 0.75
        %v1362 = vmul.f32 %v1157, 0.75
        %v1363 = vmul.f32 %v1158, 0.75
        %v1364 = vmul.f32 %v1159, 0.75
        %v1365 = vmul.f32 %v1160, 0.75
        %v1366 = vmul.f32 %v1161, 0.75
        %v1367 = vmul.f32 %v1162, 0.75
        %v1368 = vmul.f32 %v1163, 0.75
        %v1369 = vmul.f32 %v1164, 0.75
        %v1370 = vmul.f32 %v1273, 0.25
        %v1371 = vmul.f32 %v1274, 0.25
        %v1372 = vmul.f32 %v1275, 0.25
        %v1373 = vmul.f32 %v1276, 0.25
        %v1374 = vmul.f32 %v1277, 0.25
        %v1375 = vmul.f32 %v1278, 0.25
        %v1376 = vmul.f32 %v1279, 0.25
        %v1377 = vmul.f32 %v1280, 0.25
        %v1378 = vmul.f32 %v1281, 0.25
        %v1379 = vmul.f32 %v1282, 0.25
        %v1380 = vmul.f32 %v1283, 0.25
        %v1381 = vmul.f32 %v1284, 0.25
        %v1382 = vmul.f32 %v1285, 0.25
        %v1383 = vmul.f32 %v1286, 0.25
        %v1384 = vmul.f32 %v1287, 0.25
        %v1385 = vmul.f32 %v1288, 0.25
        %v1386 = vadd.f32 %v1354, %v1370
        %v1387 = vadd.f32 %v1355, %v1371
        %v1388 = vadd.f32 %v1356, %v1372
        %v1389 = vadd.f32 %v1357, %v1373
        %v1390 = vadd.f32 %v1358, %v1374
        %v1391 = vadd.f32 %v1359, %v1375
        %v1392 = vadd.f32 %v1360, %v1376
        %v1393 = vadd.f32 %v1361, %v1377
        %v1394 = vadd.f32 %v1362, %v1378
        %v1395 = vadd.f32 %v1363, %v1379
        %v1396 = vadd.f32 %v1364, %v1380
        %v1397 = vadd.f32 %v1365, %v1381
        %v1398 = vadd.f32 %v1366, %v1382
        %v1399 = vadd.f32 %v1367, %v1383
        %v1400 = vadd.f32 %v1368, %v1384
        %v1401 = vadd.f32 %v1369, %v1385
        %v1402 = vmul.f32 %v1338, 0.25
        %v1403 = vmul.f32 %v1339, 0.25
        %v1404 = vmul.f32 %v1340, 0.25
        %v1405 = vmul.f32 %v1341, 0.25
        %v1406 = vmul.f32 %v1342, 0.25
        %v1407 = vmul.f32 %v1343, 0.25
        %v1408 = vmul.f32 %v1344, 0.25
        %v1409 = vmul.f32 %v1345, 0.25
        %v1410 = vmul.f32 %v1346, 0.25
        %v1411 = vmul.f32 %v1347, 0.25
        %v1412 = vmul.f32 %v1348, 0.25
        %v1413 = vmul.f32 %v1349, 0.25
        %v1414 = vmul.f32 %v1350, 0.25
        %v1415 = vmul.f32 %v1351, 0.25
        %v1416 = vmul.f32 %v1352, 0.25
        %v1417 = vmul.f32 %v1353, 0.25
        %v1418 = vadd.f32 %v1354, %v1402
        %v1419 = vadd.f32 %v1355, %v1403
        %v1420 = vadd.f32 %v1356, %v1404
        %v1421 = vadd.f32 %v1357, %v1405
        %v1422 = vadd.f32 %v1358, %v1406
        %v1423 = vadd.f32 %v1359, %v1407
        %v1424 = vadd.f32 %v1360, %v1408
        %v1425 = vadd.f32 %v1361, %v1409
        %v1426 = vadd.f32 %v1362, %v1410
        %v1427 = vadd.f32 %v1363, %v1411
        %v1428 = vadd.f32 %v1364, %v1412
        %v1429 = vadd.f32 %v1365, %v1413
        %v1430 = vadd.f32 %v1366, %v1414
        %v1431 = vadd.f32 %v1367, %v1415
        %v1432 = vadd.f32 %v1368, %v1416
        %v1433 = vadd.f32 %v1369, %v1417
        %1434 = vrot.lane.b32.xlu0 %v1386, 1
        %v1435 = vpop.permute.xlu0 %1434
        %1436 = vrot.lane.b32.xlu0 %v1388, 1
        %v1437 = vpop.permute.xlu0 %1436
        %1438 = vrot.lane.b32.xlu0 %v1390, 1
        %v1439 = vpop.permute.xlu0 %1438
        %1440 = vrot.lane.b32.xlu0 %v1392, 1
        %v1441 = vpop.permute.xlu0 %1440
        %1442 = vrot.lane.b32.xlu0 %v1394, 1
        %v1443 = vpop.permute.xlu0 %1442
        %1444 = vrot.lane.b32.xlu0 %v1396, 1
        %v1445 = vpop.permute.xlu0 %1444
        %1446 = vrot.lane.b32.xlu0 %v1398, 1
        %v1447 = vpop.permute.xlu0 %1446
        %1448 = vrot.lane.b32.xlu0 %v1400, 1
        %v1449 = vpop.permute.xlu0 %1448
        %1450 = vrot.lane.b32.xlu0 %v1387, 1
        %v1451 = vpop.permute.xlu0 %1450
        %1452 = vrot.lane.b32.xlu0 %v1389, 1
        %v1453 = vpop.permute.xlu0 %1452
        %1454 = vrot.lane.b32.xlu0 %v1391, 1
        %v1455 = vpop.permute.xlu0 %1454
        %1456 = vrot.lane.b32.xlu0 %v1393, 1
        %v1457 = vpop.permute.xlu0 %1456
        %1458 = vrot.lane.b32.xlu0 %v1395, 1
        %v1459 = vpop.permute.xlu0 %1458
        %1460 = vrot.lane.b32.xlu0 %v1397, 1
        %v1461 = vpop.permute.xlu0 %1460
        %1462 = vrot.lane.b32.xlu0 %v1399, 1
        %v1463 = vpop.permute.xlu0 %1462
        %1464 = vrot.lane.b32.xlu0 %v1401, 1
        %v1465 = vpop.permute.xlu0 %1464
        %vm1466 = vcmp.lt.s32.totalorder %v1166, 1
        %v1467 = vsel %vm1466, %v1435, %v1451
        %v1468 = vsel %vm1466, %v1437, %v1453
        %v1469 = vsel %vm1466, %v1439, %v1455
        %v1470 = vsel %vm1466, %v1441, %v1457
        %v1471 = vsel %vm1466, %v1443, %v1459
        %v1472 = vsel %vm1466, %v1445, %v1461
        %v1473 = vsel %vm1466, %v1447, %v1463
        %v1474 = vsel %vm1466, %v1449, %v1465
        %v1475 = vsel %vm1466, %v1451, %v1435
        %v1476 = vsel %vm1466, %v1453, %v1437
        %v1477 = vsel %vm1466, %v1455, %v1439
        %v1478 = vsel %vm1466, %v1457, %v1441
        %v1479 = vsel %vm1466, %v1459, %v1443
        %v1480 = vsel %vm1466, %v1461, %v1445
        %v1481 = vsel %vm1466, %v1463, %v1447
        %v1482 = vsel %vm1466, %v1465, %v1449
        %v1483 = vsel %vm1220, %v1386, %v1475
        %v1484 = vsel %vm1221, %v1387, %v1467
        %v1485 = vsel %vm1220, %v1388, %v1476
        %v1486 = vsel %vm1221, %v1389, %v1468
        %v1487 = vsel %vm1220, %v1390, %v1477
        %v1488 = vsel %vm1221, %v1391, %v1469
        %v1489 = vsel %vm1220, %v1392, %v1478
        %v1490 = vsel %vm1221, %v1393, %v1470
        %v1491 = vsel %vm1220, %v1394, %v1479
        %v1492 = vsel %vm1221, %v1395, %v1471
        %v1493 = vsel %vm1220, %v1396, %v1480
        %v1494 = vsel %vm1221, %v1397, %v1472
        %v1495 = vsel %vm1220, %v1398, %v1481
        %v1496 = vsel %vm1221, %v1399, %v1473
        %v1497 = vsel %vm1220, %v1400, %v1482
        %v1498 = vsel %vm1221, %v1401, %v1474
        %1499 = vrot.lane.b32.xlu0 %v1386, 127
        %v1500 = vpop.permute.xlu0 %1499
        %1501 = vrot.lane.b32.xlu0 %v1388, 127
        %v1502 = vpop.permute.xlu0 %1501
        %1503 = vrot.lane.b32.xlu0 %v1390, 127
        %v1504 = vpop.permute.xlu0 %1503
        %1505 = vrot.lane.b32.xlu0 %v1392, 127
        %v1506 = vpop.permute.xlu0 %1505
        %1507 = vrot.lane.b32.xlu0 %v1394, 127
        %v1508 = vpop.permute.xlu0 %1507
        %1509 = vrot.lane.b32.xlu0 %v1396, 127
        %v1510 = vpop.permute.xlu0 %1509
        %1511 = vrot.lane.b32.xlu0 %v1398, 127
        %v1512 = vpop.permute.xlu0 %1511
        %1513 = vrot.lane.b32.xlu0 %v1400, 127
        %v1514 = vpop.permute.xlu0 %1513
        %1515 = vrot.lane.b32.xlu0 %v1387, 127
        %v1516 = vpop.permute.xlu0 %1515
        %1517 = vrot.lane.b32.xlu0 %v1389, 127
        %v1518 = vpop.permute.xlu0 %1517
        %1519 = vrot.lane.b32.xlu0 %v1391, 127
        %v1520 = vpop.permute.xlu0 %1519
        %1521 = vrot.lane.b32.xlu0 %v1393, 127
        %v1522 = vpop.permute.xlu0 %1521
        %1523 = vrot.lane.b32.xlu0 %v1395, 127
        %v1524 = vpop.permute.xlu0 %1523
        %1525 = vrot.lane.b32.xlu0 %v1397, 127
        %v1526 = vpop.permute.xlu0 %1525
        %1527 = vrot.lane.b32.xlu0 %v1399, 127
        %v1528 = vpop.permute.xlu0 %1527
        %1529 = vrot.lane.b32.xlu0 %v1401, 127
        %v1530 = vpop.permute.xlu0 %1529
        %vm1531 = vcmp.lt.s32.totalorder %v1166, 127
        %v1532 = vsel %vm1531, %v1500, %v1516
        %v1533 = vsel %vm1531, %v1502, %v1518
        %v1534 = vsel %vm1531, %v1504, %v1520
        %v1535 = vsel %vm1531, %v1506, %v1522
        %v1536 = vsel %vm1531, %v1508, %v1524
        %v1537 = vsel %vm1531, %v1510, %v1526
        %v1538 = vsel %vm1531, %v1512, %v1528
        %v1539 = vsel %vm1531, %v1514, %v1530
        %v1540 = vsel %vm1531, %v1516, %v1500
        %v1541 = vsel %vm1531, %v1518, %v1502
        %v1542 = vsel %vm1531, %v1520, %v1504
        %v1543 = vsel %vm1531, %v1522, %v1506
        %v1544 = vsel %vm1531, %v1524, %v1508
        %v1545 = vsel %vm1531, %v1526, %v1510
        %v1546 = vsel %vm1531, %v1528, %v1512
        %v1547 = vsel %vm1531, %v1530, %v1514
        %v1548 = vsel %vm1222, %v1386, %v1532
        %v1549 = vsel %vm1223, %v1387, %v1540
        %v1550 = vsel %vm1222, %v1388, %v1533
        %v1551 = vsel %vm1223, %v1389, %v1541
        %v1552 = vsel %vm1222, %v1390, %v1534
        %v1553 = vsel %vm1223, %v1391, %v1542
        %v1554 = vsel %vm1222, %v1392, %v1535
        %v1555 = vsel %vm1223, %v1393, %v1543
        %v1556 = vsel %vm1222, %v1394, %v1536
        %v1557 = vsel %vm1223, %v1395, %v1544
        %v1558 = vsel %vm1222, %v1396, %v1537
        %v1559 = vsel %vm1223, %v1397, %v1545
        %v1560 = vsel %vm1222, %v1398, %v1538
        %v1561 = vsel %vm1223, %v1399, %v1546
        %v1562 = vsel %vm1222, %v1400, %v1539
        %v1563 = vsel %vm1223, %v1401, %v1547
        %v1564 = vmul.f32 %v1386, 0.75
        %v1565 = vmul.f32 %v1387, 0.75
        %v1566 = vmul.f32 %v1388, 0.75
        %v1567 = vmul.f32 %v1389, 0.75
        %v1568 = vmul.f32 %v1390, 0.75
        %v1569 = vmul.f32 %v1391, 0.75
        %v1570 = vmul.f32 %v1392, 0.75
        %v1571 = vmul.f32 %v1393, 0.75
        %v1572 = vmul.f32 %v1394, 0.75
        %v1573 = vmul.f32 %v1395, 0.75
        %v1574 = vmul.f32 %v1396, 0.75
        %v1575 = vmul.f32 %v1397, 0.75
        %v1576 = vmul.f32 %v1398, 0.75
        %v1577 = vmul.f32 %v1399, 0.75
        %v1578 = vmul.f32 %v1400, 0.75
        %v1579 = vmul.f32 %v1401, 0.75
        %v1580 = vmul.f32 %v1483, 0.25
        %v1581 = vmul.f32 %v1484, 0.25
        %v1582 = vmul.f32 %v1485, 0.25
        %v1583 = vmul.f32 %v1486, 0.25
        %v1584 = vmul.f32 %v1487, 0.25
        %v1585 = vmul.f32 %v1488, 0.25
        %v1586 = vmul.f32 %v1489, 0.25
        %v1587 = vmul.f32 %v1490, 0.25
        %v1588 = vmul.f32 %v1491, 0.25
        %v1589 = vmul.f32 %v1492, 0.25
        %v1590 = vmul.f32 %v1493, 0.25
        %v1591 = vmul.f32 %v1494, 0.25
        %v1592 = vmul.f32 %v1495, 0.25
        %v1593 = vmul.f32 %v1496, 0.25
        %v1594 = vmul.f32 %v1497, 0.25
        %v1595 = vmul.f32 %v1498, 0.25
        %v1596 = vadd.f32 %v1564, %v1580
        %v1597 = vadd.f32 %v1565, %v1581
        %v1598 = vadd.f32 %v1566, %v1582
        %v1599 = vadd.f32 %v1567, %v1583
        %v1600 = vadd.f32 %v1568, %v1584
        %v1601 = vadd.f32 %v1569, %v1585
        %v1602 = vadd.f32 %v1570, %v1586
        %v1603 = vadd.f32 %v1571, %v1587
        %v1604 = vadd.f32 %v1572, %v1588
        %v1605 = vadd.f32 %v1573, %v1589
        %v1606 = vadd.f32 %v1574, %v1590
        %v1607 = vadd.f32 %v1575, %v1591
        %v1608 = vadd.f32 %v1576, %v1592
        %v1609 = vadd.f32 %v1577, %v1593
        %v1610 = vadd.f32 %v1578, %v1594
        %v1611 = vadd.f32 %v1579, %v1595
        %1612 = vst [vmem:[%s268] sm:$0xff] %v1596
        %1613 = vst [vmem:[%s268 + $0x8] sm:$0xff] %v1597
        %1614 = vst [vmem:[%s268 + $0x10] sm:$0xff] %v1598
        %1615 = vst [vmem:[%s268 + $0x18] sm:$0xff] %v1599
        %1616 = vst [vmem:[%s268 + $0x20] sm:$0xff] %v1600
        %1617 = vst [vmem:[%s268 + $0x28] sm:$0xff] %v1601
        %1618 = vst [vmem:[%s268 + $0x30] sm:$0xff] %v1602
        %1619 = vst [vmem:[%s268 + $0x38] sm:$0xff] %v1603
        %1620 = vst [vmem:[%s268 + $0x40] sm:$0xff] %v1604
        %1621 = vst [vmem:[%s268 + $0x48] sm:$0xff] %v1605
        %1622 = vst [vmem:[%s268 + $0x50] sm:$0xff] %v1606
        %1623 = vst [vmem:[%s268 + $0x58] sm:$0xff] %v1607
        %1624 = vst [vmem:[%s268 + $0x60] sm:$0xff] %v1608
        %1625 = vst [vmem:[%s268 + $0x68] sm:$0xff] %v1609
        %1626 = vst [vmem:[%s268 + $0x70] sm:$0xff] %v1610
        %1627 = vst [vmem:[%s268 + $0x78] sm:$0xff] %v1611
        %v1628 = vmul.f32 %v1548, 0.25
        %v1629 = vmul.f32 %v1549, 0.25
        %v1630 = vmul.f32 %v1550, 0.25
        %v1631 = vmul.f32 %v1551, 0.25
        %v1632 = vmul.f32 %v1552, 0.25
        %v1633 = vmul.f32 %v1553, 0.25
        %v1634 = vmul.f32 %v1554, 0.25
        %v1635 = vmul.f32 %v1555, 0.25
        %v1636 = vmul.f32 %v1556, 0.25
        %v1637 = vmul.f32 %v1557, 0.25
        %v1638 = vmul.f32 %v1558, 0.25
        %v1639 = vmul.f32 %v1559, 0.25
        %v1640 = vmul.f32 %v1560, 0.25
        %v1641 = vmul.f32 %v1561, 0.25
        %v1642 = vmul.f32 %v1562, 0.25
        %v1643 = vmul.f32 %v1563, 0.25
        %v1644 = vadd.f32 %v1564, %v1628
        %v1645 = vadd.f32 %v1565, %v1629
        %v1646 = vadd.f32 %v1566, %v1630
        %v1647 = vadd.f32 %v1567, %v1631
        %v1648 = vadd.f32 %v1568, %v1632
        %v1649 = vadd.f32 %v1569, %v1633
        %v1650 = vadd.f32 %v1570, %v1634
        %v1651 = vadd.f32 %v1571, %v1635
        %v1652 = vadd.f32 %v1572, %v1636
        %v1653 = vadd.f32 %v1573, %v1637
        %v1654 = vadd.f32 %v1574, %v1638
        %v1655 = vadd.f32 %v1575, %v1639
        %v1656 = vadd.f32 %v1576, %v1640
        %v1657 = vadd.f32 %v1577, %v1641
        %v1658 = vadd.f32 %v1578, %v1642
        %v1659 = vadd.f32 %v1579, %v1643
        %s1660 = scalar_lea.vmem %s268, 128 [#allocation3]
        %1661 = vst [vmem:[%s1660] sm:$0xff] %v1644
        %1662 = vst [vmem:[%s1660 + $0x8] sm:$0xff] %v1645
        %1663 = vst [vmem:[%s1660 + $0x10] sm:$0xff] %v1646
        %1664 = vst [vmem:[%s1660 + $0x18] sm:$0xff] %v1647
        %1665 = vst [vmem:[%s1660 + $0x20] sm:$0xff] %v1648
        %1666 = vst [vmem:[%s1660 + $0x28] sm:$0xff] %v1649
        %1667 = vst [vmem:[%s1660 + $0x30] sm:$0xff] %v1650
        %1668 = vst [vmem:[%s1660 + $0x38] sm:$0xff] %v1651
        %1669 = vst [vmem:[%s1660 + $0x40] sm:$0xff] %v1652
        %1670 = vst [vmem:[%s1660 + $0x48] sm:$0xff] %v1653
        %1671 = vst [vmem:[%s1660 + $0x50] sm:$0xff] %v1654
        %1672 = vst [vmem:[%s1660 + $0x58] sm:$0xff] %v1655
        %1673 = vst [vmem:[%s1660 + $0x60] sm:$0xff] %v1656
        %1674 = vst [vmem:[%s1660 + $0x68] sm:$0xff] %v1657
        %1675 = vst [vmem:[%s1660 + $0x70] sm:$0xff] %v1658
        %1676 = vst [vmem:[%s1660 + $0x78] sm:$0xff] %v1659
        %1677 = vrot.lane.b32.xlu0 %v1418, 1
        %v1678 = vpop.permute.xlu0 %1677
        %1679 = vrot.lane.b32.xlu0 %v1420, 1
        %v1680 = vpop.permute.xlu0 %1679
        %1681 = vrot.lane.b32.xlu0 %v1422, 1
        %v1682 = vpop.permute.xlu0 %1681
        %1683 = vrot.lane.b32.xlu0 %v1424, 1
        %v1684 = vpop.permute.xlu0 %1683
        %1685 = vrot.lane.b32.xlu0 %v1426, 1
        %v1686 = vpop.permute.xlu0 %1685
        %1687 = vrot.lane.b32.xlu0 %v1428, 1
        %v1688 = vpop.permute.xlu0 %1687
        %1689 = vrot.lane.b32.xlu0 %v1430, 1
        %v1690 = vpop.permute.xlu0 %1689
        %1691 = vrot.lane.b32.xlu0 %v1432, 1
        %v1692 = vpop.permute.xlu0 %1691
        %1693 = vrot.lane.b32.xlu0 %v1419, 1
        %v1694 = vpop.permute.xlu0 %1693
        %1695 = vrot.lane.b32.xlu0 %v1421, 1
        %v1696 = vpop.permute.xlu0 %1695
        %1697 = vrot.lane.b32.xlu0 %v1423, 1
        %v1698 = vpop.permute.xlu0 %1697
        %1699 = vrot.lane.b32.xlu0 %v1425, 1
        %v1700 = vpop.permute.xlu0 %1699
        %1701 = vrot.lane.b32.xlu0 %v1427, 1
        %v1702 = vpop.permute.xlu0 %1701
        %1703 = vrot.lane.b32.xlu0 %v1429, 1
        %v1704 = vpop.permute.xlu0 %1703
        %1705 = vrot.lane.b32.xlu0 %v1431, 1
        %v1706 = vpop.permute.xlu0 %1705
        %1707 = vrot.lane.b32.xlu0 %v1433, 1
        %v1708 = vpop.permute.xlu0 %1707
        %v1709 = vsel %vm1466, %v1678, %v1694
        %v1710 = vsel %vm1466, %v1680, %v1696
        %v1711 = vsel %vm1466, %v1682, %v1698
        %v1712 = vsel %vm1466, %v1684, %v1700
        %v1713 = vsel %vm1466, %v1686, %v1702
        %v1714 = vsel %vm1466, %v1688, %v1704
        %v1715 = vsel %vm1466, %v1690, %v1706
        %v1716 = vsel %vm1466, %v1692, %v1708
        %v1717 = vsel %vm1466, %v1694, %v1678
        %v1718 = vsel %vm1466, %v1696, %v1680
        %v1719 = vsel %vm1466, %v1698, %v1682
        %v1720 = vsel %vm1466, %v1700, %v1684
        %v1721 = vsel %vm1466, %v1702, %v1686
        %v1722 = vsel %vm1466, %v1704, %v1688
        %v1723 = vsel %vm1466, %v1706, %v1690
        %v1724 = vsel %vm1466, %v1708, %v1692
        %v1725 = vsel %vm1220, %v1418, %v1717
        %v1726 = vsel %vm1221, %v1419, %v1709
        %v1727 = vsel %vm1220, %v1420, %v1718
        %v1728 = vsel %vm1221, %v1421, %v1710
        %v1729 = vsel %vm1220, %v1422, %v1719
        %v1730 = vsel %vm1221, %v1423, %v1711
        %v1731 = vsel %vm1220, %v1424, %v1720
        %v1732 = vsel %vm1221, %v1425, %v1712
        %v1733 = vsel %vm1220, %v1426, %v1721
        %v1734 = vsel %vm1221, %v1427, %v1713
        %v1735 = vsel %vm1220, %v1428, %v1722
        %v1736 = vsel %vm1221, %v1429, %v1714
        %v1737 = vsel %vm1220, %v1430, %v1723
        %v1738 = vsel %vm1221, %v1431, %v1715
        %v1739 = vsel %vm1220, %v1432, %v1724
        %v1740 = vsel %vm1221, %v1433, %v1716
        %1741 = vrot.lane.b32.xlu0 %v1418, 127
        %v1742 = vpop.permute.xlu0 %1741
        %1743 = vrot.lane.b32.xlu0 %v1420, 127
        %v1744 = vpop.permute.xlu0 %1743
        %1745 = vrot.lane.b32.xlu0 %v1422, 127
        %v1746 = vpop.permute.xlu0 %1745
        %1747 = vrot.lane.b32.xlu0 %v1424, 127
        %v1748 = vpop.permute.xlu0 %1747
        %1749 = vrot.lane.b32.xlu0 %v1426, 127
        %v1750 = vpop.permute.xlu0 %1749
        %1751 = vrot.lane.b32.xlu0 %v1428, 127
        %v1752 = vpop.permute.xlu0 %1751
        %1753 = vrot.lane.b32.xlu0 %v1430, 127
        %v1754 = vpop.permute.xlu0 %1753
        %1755 = vrot.lane.b32.xlu0 %v1432, 127
        %v1756 = vpop.permute.xlu0 %1755
        %1757 = vrot.lane.b32.xlu0 %v1419, 127
        %v1758 = vpop.permute.xlu0 %1757
        %1759 = vrot.lane.b32.xlu0 %v1421, 127
        %v1760 = vpop.permute.xlu0 %1759
        %1761 = vrot.lane.b32.xlu0 %v1423, 127
        %v1762 = vpop.permute.xlu0 %1761
        %1763 = vrot.lane.b32.xlu0 %v1425, 127
        %v1764 = vpop.permute.xlu0 %1763
        %1765 = vrot.lane.b32.xlu0 %v1427, 127
        %v1766 = vpop.permute.xlu0 %1765
        %1767 = vrot.lane.b32.xlu0 %v1429, 127
        %v1768 = vpop.permute.xlu0 %1767
        %1769 = vrot.lane.b32.xlu0 %v1431, 127
        %v1770 = vpop.permute.xlu0 %1769
        %1771 = vrot.lane.b32.xlu0 %v1433, 127
        %v1772 = vpop.permute.xlu0 %1771
        %v1773 = vsel %vm1531, %v1742, %v1758
        %v1774 = vsel %vm1531, %v1744, %v1760
        %v1775 = vsel %vm1531, %v1746, %v1762
        %v1776 = vsel %vm1531, %v1748, %v1764
        %v1777 = vsel %vm1531, %v1750, %v1766
        %v1778 = vsel %vm1531, %v1752, %v1768
        %v1779 = vsel %vm1531, %v1754, %v1770
        %v1780 = vsel %vm1531, %v1756, %v1772
        %v1781 = vsel %vm1531, %v1758, %v1742
        %v1782 = vsel %vm1531, %v1760, %v1744
        %v1783 = vsel %vm1531, %v1762, %v1746
        %v1784 = vsel %vm1531, %v1764, %v1748
        %v1785 = vsel %vm1531, %v1766, %v1750
        %v1786 = vsel %vm1531, %v1768, %v1752
        %v1787 = vsel %vm1531, %v1770, %v1754
        %v1788 = vsel %vm1531, %v1772, %v1756
        %v1789 = vsel %vm1222, %v1418, %v1773
        %v1790 = vsel %vm1223, %v1419, %v1781
        %v1791 = vsel %vm1222, %v1420, %v1774
        %v1792 = vsel %vm1223, %v1421, %v1782
        %v1793 = vsel %vm1222, %v1422, %v1775
        %v1794 = vsel %vm1223, %v1423, %v1783
        %v1795 = vsel %vm1222, %v1424, %v1776
        %v1796 = vsel %vm1223, %v1425, %v1784
        %v1797 = vsel %vm1222, %v1426, %v1777
        %v1798 = vsel %vm1223, %v1427, %v1785
        %v1799 = vsel %vm1222, %v1428, %v1778
        %v1800 = vsel %vm1223, %v1429, %v1786
        %v1801 = vsel %vm1222, %v1430, %v1779
        %v1802 = vsel %vm1223, %v1431, %v1787
        %v1803 = vsel %vm1222, %v1432, %v1780
        %v1804 = vsel %vm1223, %v1433, %v1788
        %v1805 = vmul.f32 %v1418, 0.75
        %v1806 = vmul.f32 %v1419, 0.75
        %v1807 = vmul.f32 %v1420, 0.75
        %v1808 = vmul.f32 %v1421, 0.75
        %v1809 = vmul.f32 %v1422, 0.75
        %v1810 = vmul.f32 %v1423, 0.75
        %v1811 = vmul.f32 %v1424, 0.75
        %v1812 = vmul.f32 %v1425, 0.75
        %v1813 = vmul.f32 %v1426, 0.75
        %v1814 = vmul.f32 %v1427, 0.75
        %v1815 = vmul.f32 %v1428, 0.75
        %v1816 = vmul.f32 %v1429, 0.75
        %v1817 = vmul.f32 %v1430, 0.75
        %v1818 = vmul.f32 %v1431, 0.75
        %v1819 = vmul.f32 %v1432, 0.75
        %v1820 = vmul.f32 %v1433, 0.75
        %v1821 = vmul.f32 %v1725, 0.25
        %v1822 = vmul.f32 %v1726, 0.25
        %v1823 = vmul.f32 %v1727, 0.25
        %v1824 = vmul.f32 %v1728, 0.25
        %v1825 = vmul.f32 %v1729, 0.25
        %v1826 = vmul.f32 %v1730, 0.25
        %v1827 = vmul.f32 %v1731, 0.25
        %v1828 = vmul.f32 %v1732, 0.25
        %v1829 = vmul.f32 %v1733, 0.25
        %v1830 = vmul.f32 %v1734, 0.25
        %v1831 = vmul.f32 %v1735, 0.25
        %v1832 = vmul.f32 %v1736, 0.25
        %v1833 = vmul.f32 %v1737, 0.25
        %v1834 = vmul.f32 %v1738, 0.25
        %v1835 = vmul.f32 %v1739, 0.25
        %v1836 = vmul.f32 %v1740, 0.25
        %v1837 = vadd.f32 %v1805, %v1821
        %v1838 = vadd.f32 %v1806, %v1822
        %v1839 = vadd.f32 %v1807, %v1823
        %v1840 = vadd.f32 %v1808, %v1824
        %v1841 = vadd.f32 %v1809, %v1825
        %v1842 = vadd.f32 %v1810, %v1826
        %v1843 = vadd.f32 %v1811, %v1827
        %v1844 = vadd.f32 %v1812, %v1828
        %v1845 = vadd.f32 %v1813, %v1829
        %v1846 = vadd.f32 %v1814, %v1830
        %v1847 = vadd.f32 %v1815, %v1831
        %v1848 = vadd.f32 %v1816, %v1832
        %v1849 = vadd.f32 %v1817, %v1833
        %v1850 = vadd.f32 %v1818, %v1834
        %v1851 = vadd.f32 %v1819, %v1835
        %v1852 = vadd.f32 %v1820, %v1836
        %s1853 = scalar_lea.vmem %s268, 256 [#allocation3]
        %1854 = vst [vmem:[%s1853] sm:$0xff] %v1837
        %1855 = vst [vmem:[%s1853 + $0x8] sm:$0xff] %v1838
        %1856 = vst [vmem:[%s1853 + $0x10] sm:$0xff] %v1839
        %1857 = vst [vmem:[%s1853 + $0x18] sm:$0xff] %v1840
        %1858 = vst [vmem:[%s1853 + $0x20] sm:$0xff] %v1841
        %1859 = vst [vmem:[%s1853 + $0x28] sm:$0xff] %v1842
        %1860 = vst [vmem:[%s1853 + $0x30] sm:$0xff] %v1843
        %1861 = vst [vmem:[%s1853 + $0x38] sm:$0xff] %v1844
        %1862 = vst [vmem:[%s1853 + $0x40] sm:$0xff] %v1845
        %1863 = vst [vmem:[%s1853 + $0x48] sm:$0xff] %v1846
        %1864 = vst [vmem:[%s1853 + $0x50] sm:$0xff] %v1847
        %1865 = vst [vmem:[%s1853 + $0x58] sm:$0xff] %v1848
        %1866 = vst [vmem:[%s1853 + $0x60] sm:$0xff] %v1849
        %1867 = vst [vmem:[%s1853 + $0x68] sm:$0xff] %v1850
        %1868 = vst [vmem:[%s1853 + $0x70] sm:$0xff] %v1851
        %1869 = vst [vmem:[%s1853 + $0x78] sm:$0xff] %v1852
        %v1870 = vmul.f32 %v1789, 0.25
        %v1871 = vmul.f32 %v1790, 0.25
        %v1872 = vmul.f32 %v1791, 0.25
        %v1873 = vmul.f32 %v1792, 0.25
        %v1874 = vmul.f32 %v1793, 0.25
        %v1875 = vmul.f32 %v1794, 0.25
        %v1876 = vmul.f32 %v1795, 0.25
        %v1877 = vmul.f32 %v1796, 0.25
        %v1878 = vmul.f32 %v1797, 0.25
        %v1879 = vmul.f32 %v1798, 0.25
        %v1880 = vmul.f32 %v1799, 0.25
        %v1881 = vmul.f32 %v1800, 0.25
        %v1882 = vmul.f32 %v1801, 0.25
        %v1883 = vmul.f32 %v1802, 0.25
        %v1884 = vmul.f32 %v1803, 0.25
        %v1885 = vmul.f32 %v1804, 0.25
        %v1886 = vadd.f32 %v1805, %v1870
        %v1887 = vadd.f32 %v1806, %v1871
        %v1888 = vadd.f32 %v1807, %v1872
        %v1889 = vadd.f32 %v1808, %v1873
        %v1890 = vadd.f32 %v1809, %v1874
        %v1891 = vadd.f32 %v1810, %v1875
        %v1892 = vadd.f32 %v1811, %v1876
        %v1893 = vadd.f32 %v1812, %v1877
        %v1894 = vadd.f32 %v1813, %v1878
        %v1895 = vadd.f32 %v1814, %v1879
        %v1896 = vadd.f32 %v1815, %v1880
        %v1897 = vadd.f32 %v1816, %v1881
        %v1898 = vadd.f32 %v1817, %v1882
        %v1899 = vadd.f32 %v1818, %v1883
        %v1900 = vadd.f32 %v1819, %v1884
        %v1901 = vadd.f32 %v1820, %v1885
        %s1902 = scalar_lea.vmem %s268, 384 [#allocation3]
        %1903 = vst [vmem:[%s1902] sm:$0xff] %v1886
        %1904 = vst [vmem:[%s1902 + $0x8] sm:$0xff] %v1887
        %1905 = vst [vmem:[%s1902 + $0x10] sm:$0xff] %v1888
        %1906 = vst [vmem:[%s1902 + $0x18] sm:$0xff] %v1889
        %1907 = vst [vmem:[%s1902 + $0x20] sm:$0xff] %v1890
        %1908 = vst [vmem:[%s1902 + $0x28] sm:$0xff] %v1891
        %1909 = vst [vmem:[%s1902 + $0x30] sm:$0xff] %v1892
        %1910 = vst [vmem:[%s1902 + $0x38] sm:$0xff] %v1893
        %1911 = vst [vmem:[%s1902 + $0x40] sm:$0xff] %v1894
        %1912 = vst [vmem:[%s1902 + $0x48] sm:$0xff] %v1895
        %1913 = vst [vmem:[%s1902 + $0x50] sm:$0xff] %v1896
        %1914 = vst [vmem:[%s1902 + $0x58] sm:$0xff] %v1897
        %1915 = vst [vmem:[%s1902 + $0x60] sm:$0xff] %v1898
        %1916 = vst [vmem:[%s1902 + $0x68] sm:$0xff] %v1899
        %1917 = vst [vmem:[%s1902 + $0x70] sm:$0xff] %v1900
        %1918 = vst [vmem:[%s1902 + $0x78] sm:$0xff] %v1901
        %s1919 = sand.u32 %s90, 1
        %s1920 = sand.u32 %s90, 1
        %s1921 = smul.addr %s1920, 512
        %s1922 = scalar_lea.vmem [#allocation3], %s1921
        // Predicated region
        $region71: #{upsample_block_forward.1} parent=65 // pred_check
          %p1923 = pneg %p100
        $region72: #{upsample_block_forward.1} parent=65 // pred_check_branch
          %1925 = sbr.rel (%p1923) target = $region74
        $region73: #{upsample_block_forward.1} parent=65 // pred_region
          %s1926 = smul.u32 2, %s14
          %s1927 = smul.addr %s1926, 8
          %s1928 = scalar_lea.vmem %s3, %s1927
          // Predicated region
          $region75: #{upsample_block_forward.1} parent=73 // pred_check
            _
          $region76: #{upsample_block_forward.1} parent=73 // pred_check_branch
            %1930 = sbr.rel (0) target = $region78
          $region77: #{upsample_block_forward.1} parent=73 // pred_region
            // Predicated region
            $region79: #{upsample_block_forward.1} parent=77 // pred_check
              _
            $region80: #{upsample_block_forward.1} parent=77 // pred_check_branch
              %1932 = sbr.rel (0) target = $region82
            $region81: #{upsample_block_forward.1} parent=77 // pred_region
              loop: start=0, step=1, limit=1
              $region83: #{upsample_block_forward.1} parent=81 // loop_pre_header
                _
              $region84: #{upsample_block_forward.1} parent=81 // loop_header
                %s1934 = sphi 0, %s1938
                %p1935 = scmp.ge.s32.totalorder %s1934, 1
                %s1939 = sphi %s1922, %s1922
                %s1940 = sphi %s1928, %s1928
              $region85: #{upsample_block_forward.1} parent=81 // loop_header_branch
                %1937 = sbr.rel (%p1935) target = $region89
              $region86: #{upsample_block_forward.1} parent=81 // loop_body
                %v1941 = vld [vmem:[%s1939] sm:$0xff]
                %1942 = vst [vmem:[%s1940] sm:$0xff] %v1941
                %v1943 = vld [vmem:[%s1939 + $0x8] sm:$0xff]
                %1944 = vst [vmem:[%s1940 + $0x8] sm:$0xff] %v1943
                %v1945 = vld [vmem:[%s1939 + $0x10] sm:$0xff]
                %1946 = vst [vmem:[%s1940 + $0x20] sm:$0xff] %v1945
                %v1947 = vld [vmem:[%s1939 + $0x18] sm:$0xff]
                %1948 = vst [vmem:[%s1940 + $0x28] sm:$0xff] %v1947
                %v1949 = vld [vmem:[%s1939 + $0x20] sm:$0xff]
                %1950 = vst [vmem:[%s1940 + $0x40] sm:$0xff] %v1949
                %v1951 = vld [vmem:[%s1939 + $0x28] sm:$0xff]
                %1952 = vst [vmem:[%s1940 + $0x48] sm:$0xff] %v1951
                %v1953 = vld [vmem:[%s1939 + $0x30] sm:$0xff]
                %1954 = vst [vmem:[%s1940 + $0x60] sm:$0xff] %v1953
                %v1955 = vld [vmem:[%s1939 + $0x38] sm:$0xff]
                %1956 = vst [vmem:[%s1940 + $0x68] sm:$0xff] %v1955
                %v1957 = vld [vmem:[%s1939 + $0x40] sm:$0xff]
                %1958 = vst [vmem:[%s1940 + $0x80] sm:$0xff] %v1957
                %v1959 = vld [vmem:[%s1939 + $0x48] sm:$0xff]
                %1960 = vst [vmem:[%s1940 + $0x88] sm:$0xff] %v1959
                %v1961 = vld [vmem:[%s1939 + $0x50] sm:$0xff]
                %1962 = vst [vmem:[%s1940 + $0xa0] sm:$0xff] %v1961
                %v1963 = vld [vmem:[%s1939 + $0x58] sm:$0xff]
                %1964 = vst [vmem:[%s1940 + $0xa8] sm:$0xff] %v1963
                %v1965 = vld [vmem:[%s1939 + $0x60] sm:$0xff]
                %1966 = vst [vmem:[%s1940 + $0xc0] sm:$0xff] %v1965
                %v1967 = vld [vmem:[%s1939 + $0x68] sm:$0xff]
                %1968 = vst [vmem:[%s1940 + $0xc8] sm:$0xff] %v1967
                %v1969 = vld [vmem:[%s1939 + $0x70] sm:$0xff]
                %1970 = vst [vmem:[%s1940 + $0xe0] sm:$0xff] %v1969
                %v1971 = vld [vmem:[%s1939 + $0x78] sm:$0xff]
                %1972 = vst [vmem:[%s1940 + $0xe8] sm:$0xff] %v1971
                %v1973 = vld [vmem:[%s1939 + $0x80] sm:$0xff]
                %1974 = vst [vmem:[%s1940 + $0x100] sm:$0xff] %v1973
                %v1975 = vld [vmem:[%s1939 + $0x88] sm:$0xff]
                %1976 = vst [vmem:[%s1940 + $0x108] sm:$0xff] %v1975
                %v1977 = vld [vmem:[%s1939 + $0x90] sm:$0xff]
                %1978 = vst [vmem:[%s1940 + $0x120] sm:$0xff] %v1977
                %v1979 = vld [vmem:[%s1939 + $0x98] sm:$0xff]
                %1980 = vst [vmem:[%s1940 + $0x128] sm:$0xff] %v1979
                %v1981 = vld [vmem:[%s1939 + $0xa0] sm:$0xff]
                %1982 = vst [vmem:[%s1940 + $0x140] sm:$0xff] %v1981
                %v1983 = vld [vmem:[%s1939 + $0xa8] sm:$0xff]
                %1984 = vst [vmem:[%s1940 + $0x148] sm:$0xff] %v1983
                %v1985 = vld [vmem:[%s1939 + $0xb0] sm:$0xff]
                %1986 = vst [vmem:[%s1940 + $0x160] sm:$0xff] %v1985
                %v1987 = vld [vmem:[%s1939 + $0xb8] sm:$0xff]
                %1988 = vst [vmem:[%s1940 + $0x168] sm:$0xff] %v1987
                %v1989 = vld [vmem:[%s1939 + $0xc0] sm:$0xff]
                %1990 = vst [vmem:[%s1940 + $0x180] sm:$0xff] %v1989
                %v1991 = vld [vmem:[%s1939 + $0xc8] sm:$0xff]
                %1992 = vst [vmem:[%s1940 + $0x188] sm:$0xff] %v1991
                %v1993 = vld [vmem:[%s1939 + $0xd0] sm:$0xff]
                %1994 = vst [vmem:[%s1940 + $0x1a0] sm:$0xff] %v1993
                %v1995 = vld [vmem:[%s1939 + $0xd8] sm:$0xff]
                %1996 = vst [vmem:[%s1940 + $0x1a8] sm:$0xff] %v1995
                %v1997 = vld [vmem:[%s1939 + $0xe0] sm:$0xff]
                %1998 = vst [vmem:[%s1940 + $0x1c0] sm:$0xff] %v1997
                %v1999 = vld [vmem:[%s1939 + $0xe8] sm:$0xff]
                %2000 = vst [vmem:[%s1940 + $0x1c8] sm:$0xff] %v1999
                %v2001 = vld [vmem:[%s1939 + $0xf0] sm:$0xff]
                %2002 = vst [vmem:[%s1940 + $0x1e0] sm:$0xff] %v2001
                %v2003 = vld [vmem:[%s1939 + $0xf8] sm:$0xff]
                %2004 = vst [vmem:[%s1940 + $0x1e8] sm:$0xff] %v2003
                %v2005 = vld [vmem:[%s1939 + $0x100] sm:$0xff]
                %2006 = vst [vmem:[%s1940 + $0x200] sm:$0xff] %v2005
                %v2007 = vld [vmem:[%s1939 + $0x108] sm:$0xff]
                %2008 = vst [vmem:[%s1940 + $0x208] sm:$0xff] %v2007
                %v2009 = vld [vmem:[%s1939 + $0x110] sm:$0xff]
                %2010 = vst [vmem:[%s1940 + $0x220] sm:$0xff] %v2009
                %v2011 = vld [vmem:[%s1939 + $0x118] sm:$0xff]
                %2012 = vst [vmem:[%s1940 + $0x228] sm:$0xff] %v2011
                %v2013 = vld [vmem:[%s1939 + $0x120] sm:$0xff]
                %2014 = vst [vmem:[%s1940 + $0x240] sm:$0xff] %v2013
                %v2015 = vld [vmem:[%s1939 + $0x128] sm:$0xff]
                %2016 = vst [vmem:[%s1940 + $0x248] sm:$0xff] %v2015
                %v2017 = vld [vmem:[%s1939 + $0x130] sm:$0xff]
                %2018 = vst [vmem:[%s1940 + $0x260] sm:$0xff] %v2017
                %v2019 = vld [vmem:[%s1939 + $0x138] sm:$0xff]
                %2020 = vst [vmem:[%s1940 + $0x268] sm:$0xff] %v2019
                %v2021 = vld [vmem:[%s1939 + $0x140] sm:$0xff]
                %2022 = vst [vmem:[%s1940 + $0x280] sm:$0xff] %v2021
                %v2023 = vld [vmem:[%s1939 + $0x148] sm:$0xff]
                %2024 = vst [vmem:[%s1940 + $0x288] sm:$0xff] %v2023
                %v2025 = vld [vmem:[%s1939 + $0x150] sm:$0xff]
                %2026 = vst [vmem:[%s1940 + $0x2a0] sm:$0xff] %v2025
                %v2027 = vld [vmem:[%s1939 + $0x158] sm:$0xff]
                %2028 = vst [vmem:[%s1940 + $0x2a8] sm:$0xff] %v2027
                %v2029 = vld [vmem:[%s1939 + $0x160] sm:$0xff]
                %2030 = vst [vmem:[%s1940 + $0x2c0] sm:$0xff] %v2029
                %v2031 = vld [vmem:[%s1939 + $0x168] sm:$0xff]
                %2032 = vst [vmem:[%s1940 + $0x2c8] sm:$0xff] %v2031
                %v2033 = vld [vmem:[%s1939 + $0x170] sm:$0xff]
                %2034 = vst [vmem:[%s1940 + $0x2e0] sm:$0xff] %v2033
                %v2035 = vld [vmem:[%s1939 + $0x178] sm:$0xff]
                %2036 = vst [vmem:[%s1940 + $0x2e8] sm:$0xff] %v2035
                %v2037 = vld [vmem:[%s1939 + $0x180] sm:$0xff]
                %2038 = vst [vmem:[%s1940 + $0x300] sm:$0xff] %v2037
                %v2039 = vld [vmem:[%s1939 + $0x188] sm:$0xff]
                %2040 = vst [vmem:[%s1940 + $0x308] sm:$0xff] %v2039
                %v2041 = vld [vmem:[%s1939 + $0x190] sm:$0xff]
                %2042 = vst [vmem:[%s1940 + $0x320] sm:$0xff] %v2041
                %v2043 = vld [vmem:[%s1939 + $0x198] sm:$0xff]
                %2044 = vst [vmem:[%s1940 + $0x328] sm:$0xff] %v2043
                %v2045 = vld [vmem:[%s1939 + $0x1a0] sm:$0xff]
                %2046 = vst [vmem:[%s1940 + $0x340] sm:$0xff] %v2045
                %v2047 = vld [vmem:[%s1939 + $0x1a8] sm:$0xff]
                %2048 = vst [vmem:[%s1940 + $0x348] sm:$0xff] %v2047
                %v2049 = vld [vmem:[%s1939 + $0x1b0] sm:$0xff]
                %2050 = vst [vmem:[%s1940 + $0x360] sm:$0xff] %v2049
                %v2051 = vld [vmem:[%s1939 + $0x1b8] sm:$0xff]
                %2052 = vst [vmem:[%s1940 + $0x368] sm:$0xff] %v2051
                %v2053 = vld [vmem:[%s1939 + $0x1c0] sm:$0xff]
                %2054 = vst [vmem:[%s1940 + $0x380] sm:$0xff] %v2053
                %v2055 = vld [vmem:[%s1939 + $0x1c8] sm:$0xff]
                %2056 = vst [vmem:[%s1940 + $0x388] sm:$0xff] %v2055
                %v2057 = vld [vmem:[%s1939 + $0x1d0] sm:$0xff]
                %2058 = vst [vmem:[%s1940 + $0x3a0] sm:$0xff] %v2057
                %v2059 = vld [vmem:[%s1939 + $0x1d8] sm:$0xff]
                %2060 = vst [vmem:[%s1940 + $0x3a8] sm:$0xff] %v2059
                %v2061 = vld [vmem:[%s1939 + $0x1e0] sm:$0xff]
                %2062 = vst [vmem:[%s1940 + $0x3c0] sm:$0xff] %v2061
                %v2063 = vld [vmem:[%s1939 + $0x1e8] sm:$0xff]
                %2064 = vst [vmem:[%s1940 + $0x3c8] sm:$0xff] %v2063
                %v2065 = vld [vmem:[%s1939 + $0x1f0] sm:$0xff]
                %2066 = vst [vmem:[%s1940 + $0x3e0] sm:$0xff] %v2065
                %v2067 = vld [vmem:[%s1939 + $0x1f8] sm:$0xff]
                %2068 = vst [vmem:[%s1940 + $0x3e8] sm:$0xff] %v2067
              $region87: #{upsample_block_forward.1} parent=81 // loop_footer
                %s1938 = sadd.s32 1, %s1934
              $region88: #{upsample_block_forward.1} parent=81 // loop_footer_branch
                %1933 = sbr.rel target = $region84
              $region89: #{upsample_block_forward.1} parent=81 // loop_exit
                _
            $region82: #{upsample_block_forward.1} parent=77 // pred_fallthru
              _
            // Predicated region
            $region90: #{upsample_block_forward.1} parent=77 // pred_check
              _
            $region91: #{upsample_block_forward.1} parent=77 // pred_check_branch
              %2070 = sbr.rel target = $region93
            $region92: #{upsample_block_forward.1} parent=77 // pred_region
              _
            $region93: #{upsample_block_forward.1} parent=77 // pred_fallthru
              _
          $region78: #{upsample_block_forward.1} parent=73 // pred_fallthru
            _
          %2071 = vnop
        $region74: #{upsample_block_forward.1} parent=65 // pred_fallthru
          _
      $region66: #{upsample_block_forward.1} parent=5 // pred_fallthru
        _
      %p2072 = scmp.le.s32.totalorder 2, %s9
      // Predicated region
      $region94: #{upsample_block_forward.1} parent=5 // pred_check
        %p2073 = pneg %p2072
      $region95: #{upsample_block_forward.1} parent=5 // pred_check_branch
        %2075 = sbr.rel (%p2073) target = $region97
      $region96: #{upsample_block_forward.1} parent=5 // pred_region
        %s2076 = ssub.s32 %s9, 2
        // Predicated region
        $region98: #{upsample_block_forward.1} parent=96 // pred_check
          %p2077 = pneg %p106
        $region99: #{upsample_block_forward.1} parent=96 // pred_check_branch
          %2079 = sbr.rel (%p2077) target = $region101
        $region100: #{upsample_block_forward.1} parent=96 // pred_region
          %s2080 = sand.u32 %s91, 1
          %s2081 = sand.u32 %s91, 1
          %s2082 = smul.addr %s2081, 512
          %s2083 = scalar_lea.vmem [#allocation3], %s2082
        $region101: #{upsample_block_forward.1} parent=96 // pred_fallthru
          _
      $region97: #{upsample_block_forward.1} parent=5 // pred_fallthru
        _
    $region6: #{upsample_block_forward.1} parent=1 // loop_footer
      %s13 = sadd.s32 1, %s9
    $region7: #{upsample_block_forward.1} parent=1 // loop_footer_branch
      %8 = sbr.rel target = $region3
    $region8: #{upsample_block_forward.1} parent=1 // loop_exit
      _

</llo_original>
